<compile_context>
chip_gen: v7x
topology: tpu7x:2x2x1
jax: 0.10.0
libtpu: 0.0.40
codegen_flags: <defaults>
</compile_context>

<pallas_src>
import functools

import jax
import jax.numpy as jnp
import numpy as np
from jax.experimental import pallas as pl
from jax.experimental.pallas import tpu as pltpu

KSIZE = 7
PAD = 3


def spatial_attention_kernel(x_ref, mw_ref, b_ref, o_ref, *, H, W):
    # x_ref:  (Bt, C, HW)      VMEM, input dtype (lane-dense block)
    # mw_ref: (49, 2*Bt, HW)   VMEM f32, grid-constant masked-weight table:
    #                          rows [0, Bt)   = mask(tap) * w[max-channel, tap]
    #                          rows [Bt, 2Bt) = mask(tap) * w[avg-channel, tap]
    # b_ref:  (1,)             SMEM f32 bias
    # o_ref:  (Bt, C, HW)      VMEM, input dtype
    Bt, C, HW = x_ref.shape

    # ---- channel pooling: max in native dtype, mean accumulated in f32 ----
    x_pool = x_ref[...]                                              # used only here
    p_max = jnp.max(x_pool, axis=1).astype(jnp.float32)              # (Bt, HW)
    p_avg = jnp.sum(x_pool, axis=1, dtype=jnp.float32) * (1.0 / C)   # (Bt, HW)
    pool = jnp.concatenate([p_max, p_avg], axis=0)                   # (2*Bt, HW) stacked

    bias = b_ref[0]                                                  # scalar, hoisted

    # ---- 7x7 conv as 49 lane-rolls + masked-weight FMAs on the stacked maps ----
    acc0 = jnp.zeros((2 * Bt, HW), jnp.float32)
    acc1 = jnp.zeros((2 * Bt, HW), jnp.float32)
    for kh in range(KSIZE):
        dh = kh - PAD
        for kw in range(KSIZE):
            dw = kw - PAD
            tap = kh * KSIZE + kw
            # pool[h+dh, w+dw] == roll of the flat map by -(dh*W + dw); taps that
            # fall outside the image (incl. column wrap) carry zero weight
            # because the table was pre-masked in the wrapper.
            shift = (-(dh * W + dw)) % HW
            rolled = pltpu.roll(pool, shift, axis=1) if shift else pool
            term = mw_ref[tap] * rolled                              # (2*Bt, HW)
            if tap & 1:
                acc1 = acc1 + term
            else:
                acc0 = acc0 + term

    s = acc0 + acc1                                                  # (2*Bt, HW)
    conv = s[0:Bt] + s[Bt:2 * Bt] + bias                             # (Bt, HW) max+avg parts
    attn = jax.nn.sigmoid(conv)                                      # (Bt, HW) f32

    # ---- attn * x: re-read x from VMEM (not kept live across the tap loop) ----
    xv = x_ref[...]
    o_ref[...] = (xv * attn[:, None, :].astype(xv.dtype)).astype(o_ref.dtype)


def _largest_divisor_at_most(n, cap):
    best = 1
    for d in range(1, n + 1):
        if n % d == 0 and d <= cap:
            best = d
    return best


def _pick_block_batch(B, C, HW, itemsize):
    """Batch elements per grid step: big enough to amortize ~0.35us/step and issue
    bigger DMAs, small enough that double-buffered in+out blocks fit a modest
    VMEM budget, and leaving >=2 grid steps so both v7x TensorCores get work."""
    budget = 8 << 20                           # bytes for double-buffered x-in + out
    per_b = max(1, 4 * C * HW * itemsize)
    cap = max(1, budget // per_b)
    if B >= 2:
        cap = min(cap, max(1, B // 2))         # keep >= 2 parallel grid steps
    return _largest_divisor_at_most(B, cap)


def spatial_attention(x, weight, bias):
    """x: (B, C, H, W); weight: (1, 2, 7, 7) OIHW; bias: (1,)."""
    B, C, H, W = x.shape
    HW = H * W
    itemsize = jnp.dtype(x.dtype).itemsize

    Bt = _pick_block_batch(B, C, HW, itemsize)
    grid = (B // Bt,)

    x_flat = x.reshape(B, C, HW)                                     # lane-dense layout

    # Boundary masks folded with the conv weights (wrapper-side precompute).
    pos = np.arange(HW, dtype=np.int64)
    rows, cols = pos // W, pos % W
    mask = np.zeros((KSIZE * KSIZE, HW), np.float32)
    for kh in range(KSIZE):
        dh = kh - PAD
        for kw in range(KSIZE):
            dw = kw - PAD
            ok = (rows + dh >= 0) & (rows + dh < H) & (cols + dw >= 0) & (cols + dw < W)
            mask[kh * KSIZE + kw] = ok
    mask = jnp.asarray(mask)                                         # (49, HW)
    w2 = weight.reshape(2, KSIZE * KSIZE).astype(jnp.float32)        # (2, 49): [max-ch, avg-ch]
    mw = mask[:, None, :] * jnp.transpose(w2)[:, :, None]            # (49, 2, HW)
    mw = jnp.repeat(mw, Bt, axis=1)                                  # (49, 2*Bt, HW)

    b_flat = bias.reshape(-1).astype(jnp.float32)                    # (1,)

    # VMEM budget: double-buffered in/out blocks + resident weight table + slack,
    # clamped so the scoped limit is valid on 64 MiB (v7x) parts.
    pad_sub = -(-(2 * Bt) // 8) * 8
    pad_lane = -(-HW // 128) * 128
    table_bytes = (KSIZE * KSIZE) * pad_sub * pad_lane * 4
    need = 4 * Bt * C * HW * itemsize + table_bytes + (4 << 20)
    vmem_limit = int(min(max(need, 32 << 20), 64 << 20))

    kernel = functools.partial(spatial_attention_kernel, H=H, W=W)

    out_flat = pl.pallas_call(
        kernel,
        out_shape=jax.ShapeDtypeStruct((B, C, HW), x.dtype),
        grid_spec=pltpu.PrefetchScalarGridSpec(
            num_scalar_prefetch=0,
            grid=grid,
            in_specs=[
                pl.BlockSpec((Bt, C, HW), lambda b: (b, 0, 0)),
                pl.BlockSpec((KSIZE * KSIZE, 2 * Bt, HW), lambda b: (0, 0, 0)),
                pl.BlockSpec(memory_space=pltpu.MemorySpace.SMEM),
            ],
            out_specs=pl.BlockSpec((Bt, C, HW), lambda b: (b, 0, 0)),
        ),
        compiler_params=pltpu.CompilerParams(
            dimension_semantics=("parallel",),
            vmem_limit_bytes=vmem_limit,
        ),
    )(x_flat, mw, b_flat)

    return out_flat.reshape(B, C, H, W)


def reference(x, weight, bias):
    """Pure-JAX reference matching the PyTorch forward."""
    max_pool = jnp.max(x, axis=1, keepdims=True)
    avg_pool = jnp.mean(x, axis=1, keepdims=True)
    pool = jnp.concatenate([max_pool, avg_pool], axis=1)
    conv = jax.lax.conv_general_dilated(
        pool, weight, window_strides=(1, 1),
        padding=((PAD, PAD), (PAD, PAD)),
        dimension_numbers=("NCHW", "OIHW", "NCHW"),
    ) + bias.reshape(1, 1, 1, 1)
    attn = jax.nn.sigmoid(conv)
    return attn * x


if __name__ == "__main__":
    key = jax.random.PRNGKey(0)
    kx, kw, kb = jax.random.split(key, 3)

    B, C, H, W = 2, 4, 16, 16
    x = jax.random.normal(kx, (B, C, H, W), dtype=jnp.float32)

    # Deterministic init matching PyTorch Conv2d default: U(-1/sqrt(fan_in), +1/sqrt(fan_in)).
    fan_in = 2 * KSIZE * KSIZE
    bound = 1.0 / jnp.sqrt(jnp.float32(fan_in))
    weight = jax.random.uniform(kw, (1, 2, KSIZE, KSIZE), jnp.float32, -bound, bound)
    bias = jax.random.uniform(kb, (1,), jnp.float32, -bound, bound)

    out = spatial_attention(x, weight, bias)
    out = jax.block_until_ready(out)

    ref = reference(x, weight, bias)
    assert out.shape == (B, C, H, W)
    assert jnp.allclose(out, ref, atol=1e-5, rtol=1e-5), "mismatch vs JAX reference"

    print("KERNEL_OK")
</pallas_src>

<mosaic_0001>
module attributes {stable_mosaic.version = 11 : i64} {
  func.func @spatial_attention_kernel(%arg0: i32, %arg1: memref<1x4x256xf32, #tpu.memory_space<vmem>>, %arg2: memref<49x2x256xf32, #tpu.memory_space<vmem>>, %arg3: memref<1xf32, #tpu.memory_space<smem>>, %arg4: memref<1x4x256xf32, #tpu.memory_space<vmem>>) attributes {dimension_semantics = [#tpu.dimension_semantics<parallel>], iteration_bounds = array<i64: 2>, scalar_prefetch = 0 : i64, scratch_operands = 0 : i64, tpu.core_type = #tpu.core_type<tc>, window_params = [{transform_indices = @transform_0, window_bounds = array<i64: 1, 4, 256>}, {pipeline_mode = #tpu.pipeline_mode<synchronous>, transform_indices = @transform_1, window_bounds = array<i64: 49, 2, 256>}, {transform_indices = @transform_2, window_bounds = array<i64: 1>}, {transform_indices = @transform_3, window_bounds = array<i64: 1, 4, 256>}]} {
    %c0 = arith.constant 0 : index
    %c0_0 = arith.constant 0 : index
    %c0_1 = arith.constant 0 : index
    %0 = vector.load %arg1[%c0, %c0_0, %c0_1] : memref<1x4x256xf32, #tpu.memory_space<vmem>>, vector<1x4x256xf32>
    %cst = arith.constant dense<0xFF800000> : vector<1x256xf32>
    %1 = vector.multi_reduction <maximumf>, %0, %cst [1] : vector<1x4x256xf32> to vector<1x256xf32>
    %cst_2 = arith.constant dense<0.000000e+00> : vector<1x256xf32>
    %2 = vector.multi_reduction <add>, %0, %cst_2 [1] : vector<1x4x256xf32> to vector<1x256xf32>
    %cst_3 = arith.constant 2.500000e-01 : f32
    %3 = vector.broadcast %cst_3 : f32 to vector<1x256xf32>
    %4 = arith.mulf %2, %3 : vector<1x256xf32>
    %5 = tpu.concatenate %1, %4 in 0 : vector<1x256xf32>, vector<1x256xf32> -> vector<2x256xf32>
    %c0_4 = arith.constant 0 : index
    %6 = memref.load %arg3[%c0_4] : memref<1xf32, #tpu.memory_space<smem>>
    %cst_5 = arith.constant 0.000000e+00 : f32
    %7 = vector.broadcast %cst_5 : f32 to vector<2x256xf32>
    %cst_6 = arith.constant 0.000000e+00 : f32
    %8 = vector.broadcast %cst_6 : f32 to vector<2x256xf32>
    %c51_i32 = arith.constant 51 : i32
    %9 = tpu.dynamic_rotate %5 by %c51_i32 dim 1 : vector<2x256xf32>, i32 -> vector<2x256xf32>
    %c0_7 = arith.constant 0 : index
    %c0_8 = arith.constant 0 : index
    %c0_9 = arith.constant 0 : index
    %10 = vector.load %arg2[%c0_7, %c0_8, %c0_9] : memref<49x2x256xf32, #tpu.memory_space<vmem>>, vector<1x2x256xf32>
    %11 = vector.shape_cast %10 : vector<1x2x256xf32> to vector<2x256xf32>
    %12 = arith.mulf %11, %9 : vector<2x256xf32>
    %13 = arith.addf %7, %12 : vector<2x256xf32>
    %c50_i32 = arith.constant 50 : i32
    %14 = tpu.dynamic_rotate %5 by %c50_i32 dim 1 : vector<2x256xf32>, i32 -> vector<2x256xf32>
    %c1 = arith.constant 1 : index
    %c0_10 = arith.constant 0 : index
    %c0_11 = arith.constant 0 : index
    %15 = vector.load %arg2[%c1, %c0_10, %c0_11] : memref<49x2x256xf32, #tpu.memory_space<vmem>>, vector<1x2x256xf32>
    %16 = vector.shape_cast %15 : vector<1x2x256xf32> to vector<2x256xf32>
    %17 = arith.mulf %16, %14 : vector<2x256xf32>
    %18 = arith.addf %8, %17 : vector<2x256xf32>
    %c49_i32 = arith.constant 49 : i32
    %19 = tpu.dynamic_rotate %5 by %c49_i32 dim 1 : vector<2x256xf32>, i32 -> vector<2x256xf32>
    %c2 = arith.constant 2 : index
    %c0_12 = arith.constant 0 : index
    %c0_13 = arith.constant 0 : index
    %20 = vector.load %arg2[%c2, %c0_12, %c0_13] : memref<49x2x256xf32, #tpu.memory_space<vmem>>, vector<1x2x256xf32>
    %21 = vector.shape_cast %20 : vector<1x2x256xf32> to vector<2x256xf32>
    %22 = arith.mulf %21, %19 : vector<2x256xf32>
    %23 = arith.addf %13, %22 : vector<2x256xf32>
    %c48_i32 = arith.constant 48 : i32
    %24 = tpu.dynamic_rotate %5 by %c48_i32 dim 1 : vector<2x256xf32>, i32 -> vector<2x256xf32>
    %c3 = arith.constant 3 : index
    %c0_14 = arith.constant 0 : index
    %c0_15 = arith.constant 0 : index
    %25 = vector.load %arg2[%c3, %c0_14, %c0_15] : memref<49x2x256xf32, #tpu.memory_space<vmem>>, vector<1x2x256xf32>
    %26 = vector.shape_cast %25 : vector<1x2x256xf32> to vector<2x256xf32>
    %27 = arith.mulf %26, %24 : vector<2x256xf32>
    %28 = arith.addf %18, %27 : vector<2x256xf32>
    %c47_i32 = arith.constant 47 : i32
    %29 = tpu.dynamic_rotate %5 by %c47_i32 dim 1 : vector<2x256xf32>, i32 -> vector<2x256xf32>
    %c4 = arith.constant 4 : index
    %c0_16 = arith.constant 0 : index
    %c0_17 = arith.constant 0 : index
    %30 = vector.load %arg2[%c4, %c0_16, %c0_17] : memref<49x2x256xf32, #tpu.memory_space<vmem>>, vector<1x2x256xf32>
    %31 = vector.shape_cast %30 : vector<1x2x256xf32> to vector<2x256xf32>
    %32 = arith.mulf %31, %29 : vector<2x256xf32>
    %33 = arith.addf %23, %32 : vector<2x256xf32>
    %c46_i32 = arith.constant 46 : i32
    %34 = tpu.dynamic_rotate %5 by %c46_i32 dim 1 : vector<2x256xf32>, i32 -> vector<2x256xf32>
    %c5 = arith.constant 5 : index
    %c0_18 = arith.constant 0 : index
    %c0_19 = arith.constant 0 : index
    %35 = vector.load %arg2[%c5, %c0_18, %c0_19] : memref<49x2x256xf32, #tpu.memory_space<vmem>>, vector<1x2x256xf32>
    %36 = vector.shape_cast %35 : vector<1x2x256xf32> to vector<2x256xf32>
    %37 = arith.mulf %36, %34 : vector<2x256xf32>
    %38 = arith.addf %28, %37 : vector<2x256xf32>
    %c45_i32 = arith.constant 45 : i32
    %39 = tpu.dynamic_rotate %5 by %c45_i32 dim 1 : vector<2x256xf32>, i32 -> vector<2x256xf32>
    %c6 = arith.constant 6 : index
    %c0_20 = arith.constant 0 : index
    %c0_21 = arith.constant 0 : index
    %40 = vector.load %arg2[%c6, %c0_20, %c0_21] : memref<49x2x256xf32, #tpu.memory_space<vmem>>, vector<1x2x256xf32>
    %41 = vector.shape_cast %40 : vector<1x2x256xf32> to vector<2x256xf32>
    %42 = arith.mulf %41, %39 : vector<2x256xf32>
    %43 = arith.addf %33, %42 : vector<2x256xf32>
    %c35_i32 = arith.constant 35 : i32
    %44 = tpu.dynamic_rotate %5 by %c35_i32 dim 1 : vector<2x256xf32>, i32 -> vector<2x256xf32>
    %c7 = arith.constant 7 : index
    %c0_22 = arith.constant 0 : index
    %c0_23 = arith.constant 0 : index
    %45 = vector.load %arg2[%c7, %c0_22, %c0_23] : memref<49x2x256xf32, #tpu.memory_space<vmem>>, vector<1x2x256xf32>
    %46 = vector.shape_cast %45 : vector<1x2x256xf32> to vector<2x256xf32>
    %47 = arith.mulf %46, %44 : vector<2x256xf32>
    %48 = arith.addf %38, %47 : vector<2x256xf32>
    %c34_i32 = arith.constant 34 : i32
    %49 = tpu.dynamic_rotate %5 by %c34_i32 dim 1 : vector<2x256xf32>, i32 -> vector<2x256xf32>
    %c8 = arith.constant 8 : index
    %c0_24 = arith.constant 0 : index
    %c0_25 = arith.constant 0 : index
    %50 = vector.load %arg2[%c8, %c0_24, %c0_25] : memref<49x2x256xf32, #tpu.memory_space<vmem>>, vector<1x2x256xf32>
    %51 = vector.shape_cast %50 : vector<1x2x256xf32> to vector<2x256xf32>
    %52 = arith.mulf %51, %49 : vector<2x256xf32>
    %53 = arith.addf %43, %52 : vector<2x256xf32>
    %c33_i32 = arith.constant 33 : i32
    %54 = tpu.dynamic_rotate %5 by %c33_i32 dim 1 : vector<2x256xf32>, i32 -> vector<2x256xf32>
    %c9 = arith.constant 9 : index
    %c0_26 = arith.constant 0 : index
    %c0_27 = arith.constant 0 : index
    %55 = vector.load %arg2[%c9, %c0_26, %c0_27] : memref<49x2x256xf32, #tpu.memory_space<vmem>>, vector<1x2x256xf32>
    %56 = vector.shape_cast %55 : vector<1x2x256xf32> to vector<2x256xf32>
    %57 = arith.mulf %56, %54 : vector<2x256xf32>
    %58 = arith.addf %48, %57 : vector<2x256xf32>
    %c32_i32 = arith.constant 32 : i32
    %59 = tpu.dynamic_rotate %5 by %c32_i32 dim 1 : vector<2x256xf32>, i32 -> vector<2x256xf32>
    %c10 = arith.constant 10 : index
    %c0_28 = arith.constant 0 : index
    %c0_29 = arith.constant 0 : index
    %60 = vector.load %arg2[%c10, %c0_28, %c0_29] : memref<49x2x256xf32, #tpu.memory_space<vmem>>, vector<1x2x256xf32>
    %61 = vector.shape_cast %60 : vector<1x2x256xf32> to vector<2x256xf32>
    %62 = arith.mulf %61, %59 : vector<2x256xf32>
    %63 = arith.addf %53, %62 : vector<2x256xf32>
    %c31_i32 = arith.constant 31 : i32
    %64 = tpu.dynamic_rotate %5 by %c31_i32 dim 1 : vector<2x256xf32>, i32 -> vector<2x256xf32>
    %c11 = arith.constant 11 : index
    %c0_30 = arith.constant 0 : index
    %c0_31 = arith.constant 0 : index
    %65 = vector.load %arg2[%c11, %c0_30, %c0_31] : memref<49x2x256xf32, #tpu.memory_space<vmem>>, vector<1x2x256xf32>
    %66 = vector.shape_cast %65 : vector<1x2x256xf32> to vector<2x256xf32>
    %67 = arith.mulf %66, %64 : vector<2x256xf32>
    %68 = arith.addf %58, %67 : vector<2x256xf32>
    %c30_i32 = arith.constant 30 : i32
    %69 = tpu.dynamic_rotate %5 by %c30_i32 dim 1 : vector<2x256xf32>, i32 -> vector<2x256xf32>
    %c12 = arith.constant 12 : index
    %c0_32 = arith.constant 0 : index
    %c0_33 = arith.constant 0 : index
    %70 = vector.load %arg2[%c12, %c0_32, %c0_33] : memref<49x2x256xf32, #tpu.memory_space<vmem>>, vector<1x2x256xf32>
    %71 = vector.shape_cast %70 : vector<1x2x256xf32> to vector<2x256xf32>
    %72 = arith.mulf %71, %69 : vector<2x256xf32>
    %73 = arith.addf %63, %72 : vector<2x256xf32>
    %c29_i32 = arith.constant 29 : i32
    %74 = tpu.dynamic_rotate %5 by %c29_i32 dim 1 : vector<2x256xf32>, i32 -> vector<2x256xf32>
    %c13 = arith.constant 13 : index
    %c0_34 = arith.constant 0 : index
    %c0_35 = arith.constant 0 : index
    %75 = vector.load %arg2[%c13, %c0_34, %c0_35] : memref<49x2x256xf32, #tpu.memory_space<vmem>>, vector<1x2x256xf32>
    %76 = vector.shape_cast %75 : vector<1x2x256xf32> to vector<2x256xf32>
    %77 = arith.mulf %76, %74 : vector<2x256xf32>
    %78 = arith.addf %68, %77 : vector<2x256xf32>
    %c19_i32 = arith.constant 19 : i32
    %79 = tpu.dynamic_rotate %5 by %c19_i32 dim 1 : vector<2x256xf32>, i32 -> vector<2x256xf32>
    %c14 = arith.constant 14 : index
    %c0_36 = arith.constant 0 : index
    %c0_37 = arith.constant 0 : index
    %80 = vector.load %arg2[%c14, %c0_36, %c0_37] : memref<49x2x256xf32, #tpu.memory_space<vmem>>, vector<1x2x256xf32>
    %81 = vector.shape_cast %80 : vector<1x2x256xf32> to vector<2x256xf32>
    %82 = arith.mulf %81, %79 : vector<2x256xf32>
    %83 = arith.addf %73, %82 : vector<2x256xf32>
    %c18_i32 = arith.constant 18 : i32
    %84 = tpu.dynamic_rotate %5 by %c18_i32 dim 1 : vector<2x256xf32>, i32 -> vector<2x256xf32>
    %c15 = arith.constant 15 : index
    %c0_38 = arith.constant 0 : index
    %c0_39 = arith.constant 0 : index
    %85 = vector.load %arg2[%c15, %c0_38, %c0_39] : memref<49x2x256xf32, #tpu.memory_space<vmem>>, vector<1x2x256xf32>
    %86 = vector.shape_cast %85 : vector<1x2x256xf32> to vector<2x256xf32>
    %87 = arith.mulf %86, %84 : vector<2x256xf32>
    %88 = arith.addf %78, %87 : vector<2x256xf32>
    %c17_i32 = arith.constant 17 : i32
    %89 = tpu.dynamic_rotate %5 by %c17_i32 dim 1 : vector<2x256xf32>, i32 -> vector<2x256xf32>
    %c16 = arith.constant 16 : index
    %c0_40 = arith.constant 0 : index
    %c0_41 = arith.constant 0 : index
    %90 = vector.load %arg2[%c16, %c0_40, %c0_41] : memref<49x2x256xf32, #tpu.memory_space<vmem>>, vector<1x2x256xf32>
    %91 = vector.shape_cast %90 : vector<1x2x256xf32> to vector<2x256xf32>
    %92 = arith.mulf %91, %89 : vector<2x256xf32>
    %93 = arith.addf %83, %92 : vector<2x256xf32>
    %c16_i32 = arith.constant 16 : i32
    %94 = tpu.dynamic_rotate %5 by %c16_i32 dim 1 : vector<2x256xf32>, i32 -> vector<2x256xf32>
    %c17 = arith.constant 17 : index
    %c0_42 = arith.constant 0 : index
    %c0_43 = arith.constant 0 : index
    %95 = vector.load %arg2[%c17, %c0_42, %c0_43] : memref<49x2x256xf32, #tpu.memory_space<vmem>>, vector<1x2x256xf32>
    %96 = vector.shape_cast %95 : vector<1x2x256xf32> to vector<2x256xf32>
    %97 = arith.mulf %96, %94 : vector<2x256xf32>
    %98 = arith.addf %88, %97 : vector<2x256xf32>
    %c15_i32 = arith.constant 15 : i32
    %99 = tpu.dynamic_rotate %5 by %c15_i32 dim 1 : vector<2x256xf32>, i32 -> vector<2x256xf32>
    %c18 = arith.constant 18 : index
    %c0_44 = arith.constant 0 : index
    %c0_45 = arith.constant 0 : index
    %100 = vector.load %arg2[%c18, %c0_44, %c0_45] : memref<49x2x256xf32, #tpu.memory_space<vmem>>, vector<1x2x256xf32>
    %101 = vector.shape_cast %100 : vector<1x2x256xf32> to vector<2x256xf32>
    %102 = arith.mulf %101, %99 : vector<2x256xf32>
    %103 = arith.addf %93, %102 : vector<2x256xf32>
    %c14_i32 = arith.constant 14 : i32
    %104 = tpu.dynamic_rotate %5 by %c14_i32 dim 1 : vector<2x256xf32>, i32 -> vector<2x256xf32>
    %c19 = arith.constant 19 : index
    %c0_46 = arith.constant 0 : index
    %c0_47 = arith.constant 0 : index
    %105 = vector.load %arg2[%c19, %c0_46, %c0_47] : memref<49x2x256xf32, #tpu.memory_space<vmem>>, vector<1x2x256xf32>
    %106 = vector.shape_cast %105 : vector<1x2x256xf32> to vector<2x256xf32>
    %107 = arith.mulf %106, %104 : vector<2x256xf32>
    %108 = arith.addf %98, %107 : vector<2x256xf32>
    %c13_i32 = arith.constant 13 : i32
    %109 = tpu.dynamic_rotate %5 by %c13_i32 dim 1 : vector<2x256xf32>, i32 -> vector<2x256xf32>
    %c20 = arith.constant 20 : index
    %c0_48 = arith.constant 0 : index
    %c0_49 = arith.constant 0 : index
    %110 = vector.load %arg2[%c20, %c0_48, %c0_49] : memref<49x2x256xf32, #tpu.memory_space<vmem>>, vector<1x2x256xf32>
    %111 = vector.shape_cast %110 : vector<1x2x256xf32> to vector<2x256xf32>
    %112 = arith.mulf %111, %109 : vector<2x256xf32>
    %113 = arith.addf %103, %112 : vector<2x256xf32>
    %c3_i32 = arith.constant 3 : i32
    %114 = tpu.dynamic_rotate %5 by %c3_i32 dim 1 : vector<2x256xf32>, i32 -> vector<2x256xf32>
    %c21 = arith.constant 21 : index
    %c0_50 = arith.constant 0 : index
    %c0_51 = arith.constant 0 : index
    %115 = vector.load %arg2[%c21, %c0_50, %c0_51] : memref<49x2x256xf32, #tpu.memory_space<vmem>>, vector<1x2x256xf32>
    %116 = vector.shape_cast %115 : vector<1x2x256xf32> to vector<2x256xf32>
    %117 = arith.mulf %116, %114 : vector<2x256xf32>
    %118 = arith.addf %108, %117 : vector<2x256xf32>
    %c2_i32 = arith.constant 2 : i32
    %119 = tpu.dynamic_rotate %5 by %c2_i32 dim 1 : vector<2x256xf32>, i32 -> vector<2x256xf32>
    %c22 = arith.constant 22 : index
    %c0_52 = arith.constant 0 : index
    %c0_53 = arith.constant 0 : index
    %120 = vector.load %arg2[%c22, %c0_52, %c0_53] : memref<49x2x256xf32, #tpu.memory_space<vmem>>, vector<1x2x256xf32>
    %121 = vector.shape_cast %120 : vector<1x2x256xf32> to vector<2x256xf32>
    %122 = arith.mulf %121, %119 : vector<2x256xf32>
    %123 = arith.addf %113, %122 : vector<2x256xf32>
    %c1_i32 = arith.constant 1 : i32
    %124 = tpu.dynamic_rotate %5 by %c1_i32 dim 1 : vector<2x256xf32>, i32 -> vector<2x256xf32>
    %c23 = arith.constant 23 : index
    %c0_54 = arith.constant 0 : index
    %c0_55 = arith.constant 0 : index
    %125 = vector.load %arg2[%c23, %c0_54, %c0_55] : memref<49x2x256xf32, #tpu.memory_space<vmem>>, vector<1x2x256xf32>
    %126 = vector.shape_cast %125 : vector<1x2x256xf32> to vector<2x256xf32>
    %127 = arith.mulf %126, %124 : vector<2x256xf32>
    %128 = arith.addf %118, %127 : vector<2x256xf32>
    %c24 = arith.constant 24 : index
    %c0_56 = arith.constant 0 : index
    %c0_57 = arith.constant 0 : index
    %129 = vector.load %arg2[%c24, %c0_56, %c0_57] : memref<49x2x256xf32, #tpu.memory_space<vmem>>, vector<1x2x256xf32>
    %130 = vector.shape_cast %129 : vector<1x2x256xf32> to vector<2x256xf32>
    %131 = arith.mulf %130, %5 : vector<2x256xf32>
    %132 = arith.addf %123, %131 : vector<2x256xf32>
    %c255_i32 = arith.constant 255 : i32
    %133 = tpu.dynamic_rotate %5 by %c255_i32 dim 1 : vector<2x256xf32>, i32 -> vector<2x256xf32>
    %c25 = arith.constant 25 : index
    %c0_58 = arith.constant 0 : index
    %c0_59 = arith.constant 0 : index
    %134 = vector.load %arg2[%c25, %c0_58, %c0_59] : memref<49x2x256xf32, #tpu.memory_space<vmem>>, vector<1x2x256xf32>
    %135 = vector.shape_cast %134 : vector<1x2x256xf32> to vector<2x256xf32>
    %136 = arith.mulf %135, %133 : vector<2x256xf32>
    %137 = arith.addf %128, %136 : vector<2x256xf32>
    %c254_i32 = arith.constant 254 : i32
    %138 = tpu.dynamic_rotate %5 by %c254_i32 dim 1 : vector<2x256xf32>, i32 -> vector<2x256xf32>
    %c26 = arith.constant 26 : index
    %c0_60 = arith.constant 0 : index
    %c0_61 = arith.constant 0 : index
    %139 = vector.load %arg2[%c26, %c0_60, %c0_61] : memref<49x2x256xf32, #tpu.memory_space<vmem>>, vector<1x2x256xf32>
    %140 = vector.shape_cast %139 : vector<1x2x256xf32> to vector<2x256xf32>
    %141 = arith.mulf %140, %138 : vector<2x256xf32>
    %142 = arith.addf %132, %141 : vector<2x256xf32>
    %c253_i32 = arith.constant 253 : i32
    %143 = tpu.dynamic_rotate %5 by %c253_i32 dim 1 : vector<2x256xf32>, i32 -> vector<2x256xf32>
    %c27 = arith.constant 27 : index
    %c0_62 = arith.constant 0 : index
    %c0_63 = arith.constant 0 : index
    %144 = vector.load %arg2[%c27, %c0_62, %c0_63] : memref<49x2x256xf32, #tpu.memory_space<vmem>>, vector<1x2x256xf32>
    %145 = vector.shape_cast %144 : vector<1x2x256xf32> to vector<2x256xf32>
    %146 = arith.mulf %145, %143 : vector<2x256xf32>
    %147 = arith.addf %137, %146 : vector<2x256xf32>
    %c243_i32 = arith.constant 243 : i32
    %148 = tpu.dynamic_rotate %5 by %c243_i32 dim 1 : vector<2x256xf32>, i32 -> vector<2x256xf32>
    %c28 = arith.constant 28 : index
    %c0_64 = arith.constant 0 : index
    %c0_65 = arith.constant 0 : index
    %149 = vector.load %arg2[%c28, %c0_64, %c0_65] : memref<49x2x256xf32, #tpu.memory_space<vmem>>, vector<1x2x256xf32>
    %150 = vector.shape_cast %149 : vector<1x2x256xf32> to vector<2x256xf32>
    %151 = arith.mulf %150, %148 : vector<2x256xf32>
    %152 = arith.addf %142, %151 : vector<2x256xf32>
    %c242_i32 = arith.constant 242 : i32
    %153 = tpu.dynamic_rotate %5 by %c242_i32 dim 1 : vector<2x256xf32>, i32 -> vector<2x256xf32>
    %c29 = arith.constant 29 : index
    %c0_66 = arith.constant 0 : index
    %c0_67 = arith.constant 0 : index
    %154 = vector.load %arg2[%c29, %c0_66, %c0_67] : memref<49x2x256xf32, #tpu.memory_space<vmem>>, vector<1x2x256xf32>
    %155 = vector.shape_cast %154 : vector<1x2x256xf32> to vector<2x256xf32>
    %156 = arith.mulf %155, %153 : vector<2x256xf32>
    %157 = arith.addf %147, %156 : vector<2x256xf32>
    %c241_i32 = arith.constant 241 : i32
    %158 = tpu.dynamic_rotate %5 by %c241_i32 dim 1 : vector<2x256xf32>, i32 -> vector<2x256xf32>
    %c30 = arith.constant 30 : index
    %c0_68 = arith.constant 0 : index
    %c0_69 = arith.constant 0 : index
    %159 = vector.load %arg2[%c30, %c0_68, %c0_69] : memref<49x2x256xf32, #tpu.memory_space<vmem>>, vector<1x2x256xf32>
    %160 = vector.shape_cast %159 : vector<1x2x256xf32> to vector<2x256xf32>
    %161 = arith.mulf %160, %158 : vector<2x256xf32>
    %162 = arith.addf %152, %161 : vector<2x256xf32>
    %c240_i32 = arith.constant 240 : i32
    %163 = tpu.dynamic_rotate %5 by %c240_i32 dim 1 : vector<2x256xf32>, i32 -> vector<2x256xf32>
    %c31 = arith.constant 31 : index
    %c0_70 = arith.constant 0 : index
    %c0_71 = arith.constant 0 : index
    %164 = vector.load %arg2[%c31, %c0_70, %c0_71] : memref<49x2x256xf32, #tpu.memory_space<vmem>>, vector<1x2x256xf32>
    %165 = vector.shape_cast %164 : vector<1x2x256xf32> to vector<2x256xf32>
    %166 = arith.mulf %165, %163 : vector<2x256xf32>
    %167 = arith.addf %157, %166 : vector<2x256xf32>
    %c239_i32 = arith.constant 239 : i32
    %168 = tpu.dynamic_rotate %5 by %c239_i32 dim 1 : vector<2x256xf32>, i32 -> vector<2x256xf32>
    %c32 = arith.constant 32 : index
    %c0_72 = arith.constant 0 : index
    %c0_73 = arith.constant 0 : index
    %169 = vector.load %arg2[%c32, %c0_72, %c0_73] : memref<49x2x256xf32, #tpu.memory_space<vmem>>, vector<1x2x256xf32>
    %170 = vector.shape_cast %169 : vector<1x2x256xf32> to vector<2x256xf32>
    %171 = arith.mulf %170, %168 : vector<2x256xf32>
    %172 = arith.addf %162, %171 : vector<2x256xf32>
    %c238_i32 = arith.constant 238 : i32
    %173 = tpu.dynamic_rotate %5 by %c238_i32 dim 1 : vector<2x256xf32>, i32 -> vector<2x256xf32>
    %c33 = arith.constant 33 : index
    %c0_74 = arith.constant 0 : index
    %c0_75 = arith.constant 0 : index
    %174 = vector.load %arg2[%c33, %c0_74, %c0_75] : memref<49x2x256xf32, #tpu.memory_space<vmem>>, vector<1x2x256xf32>
    %175 = vector.shape_cast %174 : vector<1x2x256xf32> to vector<2x256xf32>
    %176 = arith.mulf %175, %173 : vector<2x256xf32>
    %177 = arith.addf %167, %176 : vector<2x256xf32>
    %c237_i32 = arith.constant 237 : i32
    %178 = tpu.dynamic_rotate %5 by %c237_i32 dim 1 : vector<2x256xf32>, i32 -> vector<2x256xf32>
    %c34 = arith.constant 34 : index
    %c0_76 = arith.constant 0 : index
    %c0_77 = arith.constant 0 : index
    %179 = vector.load %arg2[%c34, %c0_76, %c0_77] : memref<49x2x256xf32, #tpu.memory_space<vmem>>, vector<1x2x256xf32>
    %180 = vector.shape_cast %179 : vector<1x2x256xf32> to vector<2x256xf32>
    %181 = arith.mulf %180, %178 : vector<2x256xf32>
    %182 = arith.addf %172, %181 : vector<2x256xf32>
    %c227_i32 = arith.constant 227 : i32
    %183 = tpu.dynamic_rotate %5 by %c227_i32 dim 1 : vector<2x256xf32>, i32 -> vector<2x256xf32>
    %c35 = arith.constant 35 : index
    %c0_78 = arith.constant 0 : index
    %c0_79 = arith.constant 0 : index
    %184 = vector.load %arg2[%c35, %c0_78, %c0_79] : memref<49x2x256xf32, #tpu.memory_space<vmem>>, vector<1x2x256xf32>
    %185 = vector.shape_cast %184 : vector<1x2x256xf32> to vector<2x256xf32>
    %186 = arith.mulf %185, %183 : vector<2x256xf32>
    %187 = arith.addf %177, %186 : vector<2x256xf32>
    %c226_i32 = arith.constant 226 : i32
    %188 = tpu.dynamic_rotate %5 by %c226_i32 dim 1 : vector<2x256xf32>, i32 -> vector<2x256xf32>
    %c36 = arith.constant 36 : index
    %c0_80 = arith.constant 0 : index
    %c0_81 = arith.constant 0 : index
    %189 = vector.load %arg2[%c36, %c0_80, %c0_81] : memref<49x2x256xf32, #tpu.memory_space<vmem>>, vector<1x2x256xf32>
    %190 = vector.shape_cast %189 : vector<1x2x256xf32> to vector<2x256xf32>
    %191 = arith.mulf %190, %188 : vector<2x256xf32>
    %192 = arith.addf %182, %191 : vector<2x256xf32>
    %c225_i32 = arith.constant 225 : i32
    %193 = tpu.dynamic_rotate %5 by %c225_i32 dim 1 : vector<2x256xf32>, i32 -> vector<2x256xf32>
    %c37 = arith.constant 37 : index
    %c0_82 = arith.constant 0 : index
    %c0_83 = arith.constant 0 : index
    %194 = vector.load %arg2[%c37, %c0_82, %c0_83] : memref<49x2x256xf32, #tpu.memory_space<vmem>>, vector<1x2x256xf32>
    %195 = vector.shape_cast %194 : vector<1x2x256xf32> to vector<2x256xf32>
    %196 = arith.mulf %195, %193 : vector<2x256xf32>
    %197 = arith.addf %187, %196 : vector<2x256xf32>
    %c224_i32 = arith.constant 224 : i32
    %198 = tpu.dynamic_rotate %5 by %c224_i32 dim 1 : vector<2x256xf32>, i32 -> vector<2x256xf32>
    %c38 = arith.constant 38 : index
    %c0_84 = arith.constant 0 : index
    %c0_85 = arith.constant 0 : index
    %199 = vector.load %arg2[%c38, %c0_84, %c0_85] : memref<49x2x256xf32, #tpu.memory_space<vmem>>, vector<1x2x256xf32>
    %200 = vector.shape_cast %199 : vector<1x2x256xf32> to vector<2x256xf32>
    %201 = arith.mulf %200, %198 : vector<2x256xf32>
    %202 = arith.addf %192, %201 : vector<2x256xf32>
    %c223_i32 = arith.constant 223 : i32
    %203 = tpu.dynamic_rotate %5 by %c223_i32 dim 1 : vector<2x256xf32>, i32 -> vector<2x256xf32>
    %c39 = arith.constant 39 : index
    %c0_86 = arith.constant 0 : index
    %c0_87 = arith.constant 0 : index
    %204 = vector.load %arg2[%c39, %c0_86, %c0_87] : memref<49x2x256xf32, #tpu.memory_space<vmem>>, vector<1x2x256xf32>
    %205 = vector.shape_cast %204 : vector<1x2x256xf32> to vector<2x256xf32>
    %206 = arith.mulf %205, %203 : vector<2x256xf32>
    %207 = arith.addf %197, %206 : vector<2x256xf32>
    %c222_i32 = arith.constant 222 : i32
    %208 = tpu.dynamic_rotate %5 by %c222_i32 dim 1 : vector<2x256xf32>, i32 -> vector<2x256xf32>
    %c40 = arith.constant 40 : index
    %c0_88 = arith.constant 0 : index
    %c0_89 = arith.constant 0 : index
    %209 = vector.load %arg2[%c40, %c0_88, %c0_89] : memref<49x2x256xf32, #tpu.memory_space<vmem>>, vector<1x2x256xf32>
    %210 = vector.shape_cast %209 : vector<1x2x256xf32> to vector<2x256xf32>
    %211 = arith.mulf %210, %208 : vector<2x256xf32>
    %212 = arith.addf %202, %211 : vector<2x256xf32>
    %c221_i32 = arith.constant 221 : i32
    %213 = tpu.dynamic_rotate %5 by %c221_i32 dim 1 : vector<2x256xf32>, i32 -> vector<2x256xf32>
    %c41 = arith.constant 41 : index
    %c0_90 = arith.constant 0 : index
    %c0_91 = arith.constant 0 : index
    %214 = vector.load %arg2[%c41, %c0_90, %c0_91] : memref<49x2x256xf32, #tpu.memory_space<vmem>>, vector<1x2x256xf32>
    %215 = vector.shape_cast %214 : vector<1x2x256xf32> to vector<2x256xf32>
    %216 = arith.mulf %215, %213 : vector<2x256xf32>
    %217 = arith.addf %207, %216 : vector<2x256xf32>
    %c211_i32 = arith.constant 211 : i32
    %218 = tpu.dynamic_rotate %5 by %c211_i32 dim 1 : vector<2x256xf32>, i32 -> vector<2x256xf32>
    %c42 = arith.constant 42 : index
    %c0_92 = arith.constant 0 : index
    %c0_93 = arith.constant 0 : index
    %219 = vector.load %arg2[%c42, %c0_92, %c0_93] : memref<49x2x256xf32, #tpu.memory_space<vmem>>, vector<1x2x256xf32>
    %220 = vector.shape_cast %219 : vector<1x2x256xf32> to vector<2x256xf32>
    %221 = arith.mulf %220, %218 : vector<2x256xf32>
    %222 = arith.addf %212, %221 : vector<2x256xf32>
    %c210_i32 = arith.constant 210 : i32
    %223 = tpu.dynamic_rotate %5 by %c210_i32 dim 1 : vector<2x256xf32>, i32 -> vector<2x256xf32>
    %c43 = arith.constant 43 : index
    %c0_94 = arith.constant 0 : index
    %c0_95 = arith.constant 0 : index
    %224 = vector.load %arg2[%c43, %c0_94, %c0_95] : memref<49x2x256xf32, #tpu.memory_space<vmem>>, vector<1x2x256xf32>
    %225 = vector.shape_cast %224 : vector<1x2x256xf32> to vector<2x256xf32>
    %226 = arith.mulf %225, %223 : vector<2x256xf32>
    %227 = arith.addf %217, %226 : vector<2x256xf32>
    %c209_i32 = arith.constant 209 : i32
    %228 = tpu.dynamic_rotate %5 by %c209_i32 dim 1 : vector<2x256xf32>, i32 -> vector<2x256xf32>
    %c44 = arith.constant 44 : index
    %c0_96 = arith.constant 0 : index
    %c0_97 = arith.constant 0 : index
    %229 = vector.load %arg2[%c44, %c0_96, %c0_97] : memref<49x2x256xf32, #tpu.memory_space<vmem>>, vector<1x2x256xf32>
    %230 = vector.shape_cast %229 : vector<1x2x256xf32> to vector<2x256xf32>
    %231 = arith.mulf %230, %228 : vector<2x256xf32>
    %232 = arith.addf %222, %231 : vector<2x256xf32>
    %c208_i32 = arith.constant 208 : i32
    %233 = tpu.dynamic_rotate %5 by %c208_i32 dim 1 : vector<2x256xf32>, i32 -> vector<2x256xf32>
    %c45 = arith.constant 45 : index
    %c0_98 = arith.constant 0 : index
    %c0_99 = arith.constant 0 : index
    %234 = vector.load %arg2[%c45, %c0_98, %c0_99] : memref<49x2x256xf32, #tpu.memory_space<vmem>>, vector<1x2x256xf32>
    %235 = vector.shape_cast %234 : vector<1x2x256xf32> to vector<2x256xf32>
    %236 = arith.mulf %235, %233 : vector<2x256xf32>
    %237 = arith.addf %227, %236 : vector<2x256xf32>
    %c207_i32 = arith.constant 207 : i32
    %238 = tpu.dynamic_rotate %5 by %c207_i32 dim 1 : vector<2x256xf32>, i32 -> vector<2x256xf32>
    %c46 = arith.constant 46 : index
    %c0_100 = arith.constant 0 : index
    %c0_101 = arith.constant 0 : index
    %239 = vector.load %arg2[%c46, %c0_100, %c0_101] : memref<49x2x256xf32, #tpu.memory_space<vmem>>, vector<1x2x256xf32>
    %240 = vector.shape_cast %239 : vector<1x2x256xf32> to vector<2x256xf32>
    %241 = arith.mulf %240, %238 : vector<2x256xf32>
    %242 = arith.addf %232, %241 : vector<2x256xf32>
    %c206_i32 = arith.constant 206 : i32
    %243 = tpu.dynamic_rotate %5 by %c206_i32 dim 1 : vector<2x256xf32>, i32 -> vector<2x256xf32>
    %c47 = arith.constant 47 : index
    %c0_102 = arith.constant 0 : index
    %c0_103 = arith.constant 0 : index
    %244 = vector.load %arg2[%c47, %c0_102, %c0_103] : memref<49x2x256xf32, #tpu.memory_space<vmem>>, vector<1x2x256xf32>
    %245 = vector.shape_cast %244 : vector<1x2x256xf32> to vector<2x256xf32>
    %246 = arith.mulf %245, %243 : vector<2x256xf32>
    %247 = arith.addf %237, %246 : vector<2x256xf32>
    %c205_i32 = arith.constant 205 : i32
    %248 = tpu.dynamic_rotate %5 by %c205_i32 dim 1 : vector<2x256xf32>, i32 -> vector<2x256xf32>
    %c48 = arith.constant 48 : index
    %c0_104 = arith.constant 0 : index
    %c0_105 = arith.constant 0 : index
    %249 = vector.load %arg2[%c48, %c0_104, %c0_105] : memref<49x2x256xf32, #tpu.memory_space<vmem>>, vector<1x2x256xf32>
    %250 = vector.shape_cast %249 : vector<1x2x256xf32> to vector<2x256xf32>
    %251 = arith.mulf %250, %248 : vector<2x256xf32>
    %252 = arith.addf %242, %251 : vector<2x256xf32>
    %253 = arith.addf %252, %247 : vector<2x256xf32>
    %254 = vector.extract_strided_slice %253 {offsets = [0, 0], sizes = [1, 256], strides = [1, 1]} : vector<2x256xf32> to vector<1x256xf32>
    %255 = vector.extract_strided_slice %253 {offsets = [1, 0], sizes = [1, 256], strides = [1, 1]} : vector<2x256xf32> to vector<1x256xf32>
    %256 = arith.addf %254, %255 : vector<1x256xf32>
    %257 = vector.broadcast %6 : f32 to vector<1x256xf32>
    %258 = arith.addf %256, %257 : vector<1x256xf32>
    %259 = arith.negf %258 : vector<1x256xf32>
    %260 = math.exp %259 : vector<1x256xf32>
    %cst_106 = arith.constant 1.000000e+00 : f32
    %261 = vector.broadcast %cst_106 : f32 to vector<1x256xf32>
    %262 = arith.addf %261, %260 : vector<1x256xf32>
    %263 = arith.divf %261, %262 : vector<1x256xf32>
    %c0_107 = arith.constant 0 : index
    %c0_108 = arith.constant 0 : index
    %c0_109 = arith.constant 0 : index
    %264 = vector.load %arg1[%c0_107, %c0_108, %c0_109] : memref<1x4x256xf32, #tpu.memory_space<vmem>>, vector<1x4x256xf32>
    %265 = vector.shape_cast %263 : vector<1x256xf32> to vector<1x1x256xf32>
    %266 = vector.broadcast %265 : vector<1x1x256xf32> to vector<1x4x256xf32>
    %267 = arith.mulf %264, %266 : vector<1x4x256xf32>
    %c0_110 = arith.constant 0 : index
    %c0_111 = arith.constant 0 : index
    %c0_112 = arith.constant 0 : index
    %268 = vector.load %arg4[%c0_110, %c0_111, %c0_112] : memref<1x4x256xf32, #tpu.memory_space<vmem>>, vector<1x4x256xf32>
    tpu.vector_store %arg4[%c0_110, %c0_111, %c0_112], %267 {strides = array<i32>} : memref<1x4x256xf32, #tpu.memory_space<vmem>>, vector<1x4x256xf32>,
    return
  }
  func.func @transform_0(%arg0: i32) -> (i32, i32, i32) {
    %c0_i32 = arith.constant 0 : i32
    %c0_i32_0 = arith.constant 0 : i32
    %c0_i32_1 = arith.constant 0 : i32
    return %arg0, %c0_i32, %c0_i32_0 : i32, i32, i32
  }
  func.func @transform_1(%arg0: i32) -> (i32, i32, i32) {
    %c0_i32 = arith.constant 0 : i32
    %c0_i32_0 = arith.constant 0 : i32
    %c0_i32_1 = arith.constant 0 : i32
    %c0_i32_2 = arith.constant 0 : i32
    return %c0_i32, %c0_i32_0, %c0_i32_1 : i32, i32, i32
  }
  func.func @transform_2(%arg0: i32) -> i32 {
    %c0_i32 = arith.constant 0 : i32
    %c0_i32_0 = arith.constant 0 : i32
    return %c0_i32 : i32
  }
  func.func @transform_3(%arg0: i32) -> (i32, i32, i32) {
    %c0_i32 = arith.constant 0 : i32
    %c0_i32_0 = arith.constant 0 : i32
    %c0_i32_1 = arith.constant 0 : i32
    return %arg0, %c0_i32, %c0_i32_0 : i32, i32, i32
  }
}

</mosaic_0001>

<llo_original>
// kernel: tpu_custom_call.1
$region0: #{tpu_custom_call.1}
  #allocation0 [shape = 'u32[]', space=smem, size = 0x4, offset = 0x4, fixed_abs, tag = 'smem constant byte address 0x4 - core index']
  #allocation1 [shape = 'u32[144,128]{1,0:T(1,128)}', space=vmem, size = 0x12000, scoped, tag = 'internal scratch']
  #allocation2 [shape = 'f32[1]{0:T(128)S(6)}', space=smem, size = 0x200, scoped, tag = 'scoped memory for tpu_custom_call.1']
  %s0 = inlined_call_operand.hbm [shape: f32[2,4,256], index: 0, kind: input, shape index: {}]
  %s1 = inlined_call_operand.hbm [shape: f32[49,2,256], index: 1, kind: input, shape index: {}]
  %s2 = inlined_call_operand.<no memory space> [shape: f32[1], index: 2, kind: input, shape index: {}]
  %s3 = inlined_call_operand.hbm [shape: f32[2,4,256], index: 3, kind: output, shape index: {}]
  %s4 = sld [smem:[#allocation0]]
  $region53: #{tpu_custom_call.1} parent=0
    _
  %s6 = ssub.s32 1, %s4
  %s7 = scalar_select 0, %s6, %s4
  %8 = sst [smem:[#allocation2]] %s2
  $region1: #{tpu_custom_call.1} parent=0
    #allocation3 [shape = 'u8[8192]{0}', space=vmem, size = 0x2000, scoped, tag = 'input window, operand 0']
    #allocation4 [shape = 's32[2]{0}', space=sflag, size = 0x8, scoped, tag = 'scoped memory for tpu_custom_call.1']
    #allocation5 [shape = 's32[2]{0}', space=sflag, size = 0x8, scoped, tag = 'scoped memory for tpu_custom_call.1']
    #allocation6 [shape = 'u8[100352]{0}', space=vmem, size = 0x18800, scoped, tag = 'input window, operand 1, single buffered']
    #allocation7 [shape = 's32[1]{0}', space=sflag, size = 0x4, scoped, tag = 'scoped memory for tpu_custom_call.1']
    #allocation8 [shape = 'u8[8192]{0}', space=vmem, size = 0x2000, scoped, tag = 'output window, operand 0']
    %9 = vsyncpa [#allocation4], 0
    %s10 = scalar_lea.sflag [#allocation4], 1
    %11 = vsyncpa %s10, 0
    %12 = vsyncpa [#allocation7], 0
    %13 = vsyncpa [#allocation5], 0
    %s14 = scalar_lea.sflag [#allocation5], 1
    %15 = vsyncpa %s14, 0
    loop: start=0, step=1, limit=4
    $region2: #{tpu_custom_call.1} parent=1 // loop_pre_header
      _
    $region3: #{tpu_custom_call.1} parent=1 // loop_header
      %s17 = sphi 0, %s21
      %p18 = scmp.ge.s32.totalorder %s17, 4
      %s27 = sphi 0, %s29
      %s30 = sphi 0, %s27
      %s31 = sphi 0, %s30
      %s47 = sphi 0, %s31
      %s51 = sphi 0, %s51
      %s53 = sphi 0, %s51
      %s54 = sphi 0, %s53
      %s68 = sphi 0, %s54
      %s72 = sphi 0, %s72
      %s74 = sphi 0, %s72
      %s75 = sphi 0, %s74
      %s89 = sphi 0, %s75
      %s95 = sphi 0, %s97
      %s98 = sphi 0, %s95
      %s99 = sphi 0, %s98
      %s115 = sphi 0, %s99
    $region4: #{tpu_custom_call.1} parent=1 // loop_header_branch
      %20 = sbr.rel (%p18) target = $region8
    $region5: #{tpu_custom_call.1} parent=1 // loop_body
      %s22 = ssub.s32 %s17, 1
      %s23 = ssub.s32 %s17, 2
      %s24 = sadd.s32 %s17, 1
      %s25 = ssub.s32 %s17, %s24
      %p26 = scmp.eq.s32.totalorder %s25, 0
      %s28 = sadd.s32 %s27, 1
      %s29 = scalar_select %p26, %s27, %s28
      %p32 = pneg %p26
      %p33 = scmp.eq.s32.totalorder %s17, 1
      %p34 = por %p32, %p33
      %p35 = scmp.ne.s32.totalorder %s27, %s30
      %p36 = scmp.eq.s32.totalorder %s17, 0
      %p37 = por %p35, %p36
      %p38 = scmp.ne.s32.totalorder %s27, %s30
      %p39 = scmp.eq.s32.totalorder %s22, 1
      %p40 = por %p38, %p39
      %p41 = scmp.ne.s32.totalorder %s30, %s31
      %p42 = scmp.eq.s32.totalorder %s22, 0
      %p43 = por %p41, %p42
      %p44 = scmp.ne.s32.totalorder %s30, %s31
      %p45 = scmp.eq.s32.totalorder %s23, 1
      %p46 = por %p44, %p45
      %p48 = scmp.ne.s32.totalorder %s31, %s47
      %p49 = scmp.eq.s32.totalorder %s23, 0
      %p50 = por %p48, %p49
      %s52 = sadd.s32 %s51, 1
      %p55 = scmp.eq.s32.totalorder %s17, 1
      %p56 = scmp.ne.s32.totalorder %s51, %s53
      %p57 = scmp.eq.s32.totalorder %s17, 0
      %p58 = por %p56, %p57
      %p59 = scmp.ne.s32.totalorder %s51, %s53
      %p60 = scmp.eq.s32.totalorder %s22, 1
      %p61 = por %p59, %p60
      %p62 = scmp.ne.s32.totalorder %s53, %s54
      %p63 = scmp.eq.s32.totalorder %s22, 0
      %p64 = por %p62, %p63
      %p65 = scmp.ne.s32.totalorder %s53, %s54
      %p66 = scmp.eq.s32.totalorder %s23, 1
      %p67 = por %p65, %p66
      %p69 = scmp.ne.s32.totalorder %s54, %s68
      %p70 = scmp.eq.s32.totalorder %s23, 0
      %p71 = por %p69, %p70
      %s73 = sadd.s32 %s72, 1
      %p76 = scmp.eq.s32.totalorder %s17, 1
      %p77 = scmp.ne.s32.totalorder %s72, %s74
      %p78 = scmp.eq.s32.totalorder %s17, 0
      %p79 = por %p77, %p78
      %p80 = scmp.ne.s32.totalorder %s72, %s74
      %p81 = scmp.eq.s32.totalorder %s22, 1
      %p82 = por %p80, %p81
      %p83 = scmp.ne.s32.totalorder %s74, %s75
      %p84 = scmp.eq.s32.totalorder %s22, 0
      %p85 = por %p83, %p84
      %p86 = scmp.ne.s32.totalorder %s74, %s75
      %p87 = scmp.eq.s32.totalorder %s23, 1
      %p88 = por %p86, %p87
      %p90 = scmp.ne.s32.totalorder %s75, %s89
      %p91 = scmp.eq.s32.totalorder %s23, 0
      %p92 = por %p90, %p91
      %s93 = ssub.s32 %s17, %s24
      %p94 = scmp.eq.s32.totalorder %s93, 0
      %s96 = sadd.s32 %s95, 1
      %s97 = scalar_select %p94, %s95, %s96
      %p100 = pneg %p94
      %p101 = scmp.eq.s32.totalorder %s17, 1
      %p102 = por %p100, %p101
      %p103 = scmp.ne.s32.totalorder %s95, %s98
      %p104 = scmp.eq.s32.totalorder %s17, 0
      %p105 = por %p103, %p104
      %p106 = scmp.ne.s32.totalorder %s95, %s98
      %p107 = scmp.eq.s32.totalorder %s22, 1
      %p108 = por %p106, %p107
      %p109 = scmp.ne.s32.totalorder %s98, %s99
      %p110 = scmp.eq.s32.totalorder %s22, 0
      %p111 = por %p109, %p110
      %p112 = scmp.ne.s32.totalorder %s98, %s99
      %p113 = scmp.eq.s32.totalorder %s23, 1
      %p114 = por %p112, %p113
      %p116 = scmp.ne.s32.totalorder %s99, %s115
      %p117 = scmp.eq.s32.totalorder %s23, 0
      %p118 = por %p116, %p117
      %p119 = scmp.le.s32.totalorder 1, %s17
      %p120 = scmp.lt.s32.totalorder %s17, 3
      %p121 = pnand %p119, %p120
      %p122 = pneg %p121
      // Predicated region
      $region9: #{tpu_custom_call.1} parent=5 // pred_check
        _
      $region10: #{tpu_custom_call.1} parent=5 // pred_check_branch
        %124 = sbr.rel (%p121) target = $region12
      $region11: #{tpu_custom_call.1} parent=5 // pred_region
        %s125 = ssub.s32 %s17, 1
        // Predicated region
        $region13: #{tpu_custom_call.1} parent=11 // pred_check
          %p126 = pneg %p64
        $region14: #{tpu_custom_call.1} parent=11 // pred_check_branch
          %128 = sbr.rel (%p126) target = $region16
        $region15: #{tpu_custom_call.1} parent=11 // pred_region
          %s130 = ssub.s32 3136, 3136
          %131 = vsyncadd [#allocation7], %s130
          %s132 = sshll.u32 [#allocation6], 4
          %s133 = int_to_ptr.vmem [resolvable:$true] %s132
          %138 = dma.hbm_to_vmem [thread:$0]  %s1, 3136, %s133, [#allocation7], 64, 64, 4
        $region16: #{tpu_custom_call.1} parent=11 // pred_fallthru
          _
        // Predicated region
        $region17: #{tpu_custom_call.1} parent=11 // pred_check
          %p139 = pneg %p85
        $region18: #{tpu_custom_call.1} parent=11 // pred_check_branch
          %141 = sbr.rel (%p139) target = $region20
        $region19: #{tpu_custom_call.1} parent=11 // pred_region
          _
        $region20: #{tpu_custom_call.1} parent=11 // pred_fallthru
          _
      $region12: #{tpu_custom_call.1} parent=5 // pred_fallthru
        _
      %p142 = scmp.lt.s32.totalorder %s17, 2
      // Predicated region
      $region21: #{tpu_custom_call.1} parent=5 // pred_check
        %p143 = pneg %p142
      $region22: #{tpu_custom_call.1} parent=5 // pred_check_branch
        %145 = sbr.rel (%p143) target = $region24
      $region23: #{tpu_custom_call.1} parent=5 // pred_region
        // Predicated region
        $region25: #{tpu_custom_call.1} parent=23 // pred_check
          %p146 = pneg %p37
        $region26: #{tpu_custom_call.1} parent=23 // pred_check_branch
          %148 = sbr.rel (%p146) target = $region28
        $region27: #{tpu_custom_call.1} parent=23 // pred_region
          %s149 = sand.u32 %s27, 1
          %s150 = scalar_lea.sflag [#allocation4], %s149
          %s151 = sand.u32 %s27, 1
          %s152 = smul.addr %s151, 8
          %s153 = scalar_lea.vmem [#allocation3], %s152
          %s155 = ssub.s32 128, 128
          %156 = vsyncadd %s150, %s155
          %s157 = smul.addr %s17, 2
          %s158 = smul.addr %s157, 64
          %s159 = scalar_lea.hbm %s0, %s158
          %s161 = sshll.u32 %s153, 4
          %s162 = int_to_ptr.vmem [resolvable:$true] %s161
          %164 = dma.hbm_to_vmem [thread:$0]  %s159, 128, %s162, %s150
        $region28: #{tpu_custom_call.1} parent=23 // pred_fallthru
          _
      $region24: #{tpu_custom_call.1} parent=5 // pred_fallthru
        _
      %p165 = scmp.le.s32.totalorder 1, %s17
      %p166 = scmp.lt.s32.totalorder %s17, 3
      %p167 = pnand %p165, %p166
      %p168 = pneg %p167
      // Predicated region
      $region29: #{tpu_custom_call.1} parent=5 // pred_check
        _
      $region30: #{tpu_custom_call.1} parent=5 // pred_check_branch
        %170 = sbr.rel (%p167) target = $region32
      $region31: #{tpu_custom_call.1} parent=5 // pred_region
        %s171 = ssub.s32 %s17, 1
        %s172 = sand.u32 %s30, 1
        %s173 = scalar_lea.sflag [#allocation4], %s172
        %s174 = sand.u32 %s30, 1
        %s175 = smul.addr %s174, 8
        %s176 = scalar_lea.vmem [#allocation3], %s175
        // Predicated region
        $region33: #{tpu_custom_call.1} parent=31 // pred_check
          %p177 = pneg %p43
        $region34: #{tpu_custom_call.1} parent=31 // pred_check_branch
          %179 = sbr.rel (%p177) target = $region36
        $region35: #{tpu_custom_call.1} parent=31 // pred_region
          %180 = dma.done %s173, 128
        $region36: #{tpu_custom_call.1} parent=31 // pred_fallthru
          _
        // Predicated region
        $region37: #{tpu_custom_call.1} parent=31 // pred_check
          %p181 = pneg %p64
        $region38: #{tpu_custom_call.1} parent=31 // pred_check_branch
          %183 = sbr.rel (%p181) target = $region40
        $region39: #{tpu_custom_call.1} parent=31 // pred_region
          %184 = dma.done [#allocation7], 3136
        $region40: #{tpu_custom_call.1} parent=31 // pred_fallthru
          _
        %s185 = sand.u32 %s30, 1
        %s186 = scalar_lea.sflag [#allocation4], %s185
        %s187 = sand.u32 %s30, 1
        %s188 = smul.addr %s187, 8
        %s189 = scalar_lea.vmem [#allocation3], %s188
        %p190 = pneg %p43
        %p191 = pneg %p40
        %p192 = pneg %p64
        %p193 = pneg %p61
        %p194 = pneg %p85
        %p195 = pneg %p82
        %p196 = pneg %p111
        %p197 = pneg %p108
        %s198 = sand.u32 %s98, 1
        %s199 = scalar_lea.sflag [#allocation5], %s198
        %s200 = sand.u32 %s98, 1
        %s201 = smul.addr %s200, 8
        %s202 = scalar_lea.vmem [#allocation8], %s201
        %v203 = vld [vmem:[%s176] sm:$0xff]
        %v205 = vcombine.high %v203, %v203
        %vm207 = vcmask 1043456
        %v208 = vsel %vm207, %v203, -inf
        %v209 = vrot.slane %v208, 4
        %v210 = vmax.f32 %v208, %v209
        %v211 = vrot.slane %v210, 2
        %v212 = vmax.f32 %v210, %v211
        %v213 = vrot.slane %v212, 1
        %v214 = vmax.f32 %v212, %v213
        %v215 = vsel %vm207, %v205, -inf
        %v216 = vrot.slane %v215, 4
        %v217 = vmax.f32 %v215, %v216
        %v218 = vrot.slane %v217, 2
        %v219 = vmax.f32 %v217, %v218
        %v220 = vrot.slane %v219, 1
        %v221 = vmax.f32 %v219, %v220
        %v222 = vsel %vm207, %v203, 0.0
        %v223 = vrot.slane %v222, 4
        %v224 = vadd.f32 %v222, %v223
        %v225 = vrot.slane %v224, 2
        %v226 = vadd.f32 %v224, %v225
        %v227 = vrot.slane %v226, 1
        %v228 = vadd.f32 %v226, %v227
        %v229 = vsel %vm207, %v205, 0.0
        %v230 = vrot.slane %v229, 4
        %v231 = vadd.f32 %v229, %v230
        %v232 = vrot.slane %v231, 2
        %v233 = vadd.f32 %v231, %v232
        %v234 = vrot.slane %v233, 1
        %v235 = vadd.f32 %v233, %v234
        %v236 = vmul.f32 %v228, 0.25
        %v237 = vmul.f32 %v235, 0.25
        %vm238 = vcmask 1040384
        %v239 = vsel %vm238, %v214, %v236
        %v240 = vsel %vm238, %v221, %v237
        %s241 = sld [smem:[#allocation2]]
        %242 = vrot.lane.b32.xlu0 %v239, 51
        %v243 = vpop.permute.xlu0 %242
        %244 = vrot.lane.b32.xlu0 %v240, 51
        %v245 = vpop.permute.xlu0 %244
        %v246 = vlaneseq
        %v247 = vand.u32 %v246, 127
        %vm248 = vcmp.lt.s32.totalorder %v247, 51
        %v249 = vsel %vm248, %v243, %v245
        %v250 = vsel %vm248, %v245, %v243
        %v251 = vld [vmem:[#allocation6] sm:$0xf]
        %v254 = vcombine.low %v250, %v249
        %v256 = vunpack.c.l.s4 1983009808
        %v257 = vunpack.c.0.s8 %v256
        %v258 = vlaneseq
        %v259 = vshrl.u32 %v258, 7
        %v260 = vsub.s32 %v257, %v259
        %v261 = vrot.slane %v254, %v260
        %v263 = vmul.f32 %v251, %v261
        %v264 = vadd.f32 %v263, 0.0
        %265 = vrot.lane.b32.xlu0 %v239, 50
        %v266 = vpop.permute.xlu0 %265
        %267 = vrot.lane.b32.xlu0 %v240, 50
        %v268 = vpop.permute.xlu0 %267
        %vm269 = vcmp.lt.s32.totalorder %v247, 50
        %v270 = vsel %vm269, %v266, %v268
        %v271 = vsel %vm269, %v268, %v266
        %s272 = scalar_lea.vmem [#allocation6], 4
        %v273 = vld [vmem:[%s272] sm:$0xf]
        %v276 = vcombine.low %v271, %v270
        %v278 = vunpack.c.l.s4 1983009808
        %v279 = vunpack.c.0.s8 %v278
        %v280 = vlaneseq
        %v281 = vshrl.u32 %v280, 7
        %v282 = vsub.s32 %v279, %v281
        %v283 = vrot.slane %v276, %v282
        %v285 = vmul.f32 %v273, %v283
        %v286 = vadd.f32 %v285, 0.0
        %287 = vrot.lane.b32.xlu0 %v239, 49
        %v288 = vpop.permute.xlu0 %287
        %289 = vrot.lane.b32.xlu0 %v240, 49
        %v290 = vpop.permute.xlu0 %289
        %vm291 = vcmp.lt.s32.totalorder %v247, 49
        %v292 = vsel %vm291, %v288, %v290
        %v293 = vsel %vm291, %v290, %v288
        %s294 = scalar_lea.vmem [#allocation6], 8
        %v295 = vld [vmem:[%s294] sm:$0xf]
        %v298 = vcombine.low %v293, %v292
        %v300 = vunpack.c.l.s4 1983009808
        %v301 = vunpack.c.0.s8 %v300
        %v302 = vlaneseq
        %v303 = vshrl.u32 %v302, 7
        %v304 = vsub.s32 %v301, %v303
        %v305 = vrot.slane %v298, %v304
        %v307 = vmul.f32 %v295, %v305
        %v308 = vadd.f32 %v264, %v307
        %309 = vrot.lane.b32.xlu0 %v239, 48
        %v310 = vpop.permute.xlu0 %309
        %311 = vrot.lane.b32.xlu0 %v240, 48
        %v312 = vpop.permute.xlu0 %311
        %vm313 = vcmp.lt.s32.totalorder %v247, 48
        %v314 = vsel %vm313, %v310, %v312
        %v315 = vsel %vm313, %v312, %v310
        %s316 = scalar_lea.vmem [#allocation6], 12
        %v317 = vld [vmem:[%s316] sm:$0xf]
        %v320 = vcombine.low %v315, %v314
        %v322 = vunpack.c.l.s4 1983009808
        %v323 = vunpack.c.0.s8 %v322
        %v324 = vlaneseq
        %v325 = vshrl.u32 %v324, 7
        %v326 = vsub.s32 %v323, %v325
        %v327 = vrot.slane %v320, %v326
        %v329 = vmul.f32 %v317, %v327
        %v330 = vadd.f32 %v286, %v329
        %331 = vrot.lane.b32.xlu0 %v239, 47
        %v332 = vpop.permute.xlu0 %331
        %333 = vrot.lane.b32.xlu0 %v240, 47
        %v334 = vpop.permute.xlu0 %333
        %vm335 = vcmp.lt.s32.totalorder %v247, 47
        %v336 = vsel %vm335, %v332, %v334
        %v337 = vsel %vm335, %v334, %v332
        %s338 = scalar_lea.vmem [#allocation6], 16
        %v339 = vld [vmem:[%s338] sm:$0xf]
        %v342 = vcombine.low %v337, %v336
        %v344 = vunpack.c.l.s4 1983009808
        %v345 = vunpack.c.0.s8 %v344
        %v346 = vlaneseq
        %v347 = vshrl.u32 %v346, 7
        %v348 = vsub.s32 %v345, %v347
        %v349 = vrot.slane %v342, %v348
        %v351 = vmul.f32 %v339, %v349
        %v352 = vadd.f32 %v308, %v351
        %353 = vrot.lane.b32.xlu0 %v239, 46
        %v354 = vpop.permute.xlu0 %353
        %355 = vrot.lane.b32.xlu0 %v240, 46
        %v356 = vpop.permute.xlu0 %355
        %vm357 = vcmp.lt.s32.totalorder %v247, 46
        %v358 = vsel %vm357, %v354, %v356
        %v359 = vsel %vm357, %v356, %v354
        %s360 = scalar_lea.vmem [#allocation6], 20
        %v361 = vld [vmem:[%s360] sm:$0xf]
        %v364 = vcombine.low %v359, %v358
        %v366 = vunpack.c.l.s4 1983009808
        %v367 = vunpack.c.0.s8 %v366
        %v368 = vlaneseq
        %v369 = vshrl.u32 %v368, 7
        %v370 = vsub.s32 %v367, %v369
        %v371 = vrot.slane %v364, %v370
        %v373 = vmul.f32 %v361, %v371
        %v374 = vadd.f32 %v330, %v373
        %375 = vrot.lane.b32.xlu0 %v239, 45
        %v376 = vpop.permute.xlu0 %375
        %377 = vrot.lane.b32.xlu0 %v240, 45
        %v378 = vpop.permute.xlu0 %377
        %vm379 = vcmp.lt.s32.totalorder %v247, 45
        %v380 = vsel %vm379, %v376, %v378
        %v381 = vsel %vm379, %v378, %v376
        %s382 = scalar_lea.vmem [#allocation6], 24
        %v383 = vld [vmem:[%s382] sm:$0xf]
        %v386 = vcombine.low %v381, %v380
        %v388 = vunpack.c.l.s4 1983009808
        %v389 = vunpack.c.0.s8 %v388
        %v390 = vlaneseq
        %v391 = vshrl.u32 %v390, 7
        %v392 = vsub.s32 %v389, %v391
        %v393 = vrot.slane %v386, %v392
        %v395 = vmul.f32 %v383, %v393
        %v396 = vadd.f32 %v352, %v395
        %397 = vrot.lane.b32.xlu0 %v239, 35
        %v398 = vpop.permute.xlu0 %397
        %399 = vrot.lane.b32.xlu0 %v240, 35
        %v400 = vpop.permute.xlu0 %399
        %vm401 = vcmp.lt.s32.totalorder %v247, 35
        %v402 = vsel %vm401, %v398, %v400
        %v403 = vsel %vm401, %v400, %v398
        %s404 = scalar_lea.vmem [#allocation6], 28
        %v405 = vld [vmem:[%s404] sm:$0xf]
        %v408 = vcombine.low %v403, %v402
        %v410 = vunpack.c.l.s4 1983009808
        %v411 = vunpack.c.0.s8 %v410
        %v412 = vlaneseq
        %v413 = vshrl.u32 %v412, 7
        %v414 = vsub.s32 %v411, %v413
        %v415 = vrot.slane %v408, %v414
        %v417 = vmul.f32 %v405, %v415
        %v418 = vadd.f32 %v374, %v417
        %419 = vrot.lane.b32.xlu0 %v239, 34
        %v420 = vpop.permute.xlu0 %419
        %421 = vrot.lane.b32.xlu0 %v240, 34
        %v422 = vpop.permute.xlu0 %421
        %vm423 = vcmp.lt.s32.totalorder %v247, 34
        %v424 = vsel %vm423, %v420, %v422
        %v425 = vsel %vm423, %v422, %v420
        %s426 = scalar_lea.vmem [#allocation6], 32
        %v427 = vld [vmem:[%s426] sm:$0xf]
        %v430 = vcombine.low %v425, %v424
        %v432 = vunpack.c.l.s4 1983009808
        %v433 = vunpack.c.0.s8 %v432
        %v434 = vlaneseq
        %v435 = vshrl.u32 %v434, 7
        %v436 = vsub.s32 %v433, %v435
        %v437 = vrot.slane %v430, %v436
        %v439 = vmul.f32 %v427, %v437
        %v440 = vadd.f32 %v396, %v439
        %441 = vrot.lane.b32.xlu0 %v239, 33
        %v442 = vpop.permute.xlu0 %441
        %443 = vrot.lane.b32.xlu0 %v240, 33
        %v444 = vpop.permute.xlu0 %443
        %vm445 = vcmp.lt.s32.totalorder %v247, 33
        %v446 = vsel %vm445, %v442, %v444
        %v447 = vsel %vm445, %v444, %v442
        %s448 = scalar_lea.vmem [#allocation6], 36
        %v449 = vld [vmem:[%s448] sm:$0xf]
        %v452 = vcombine.low %v447, %v446
        %v454 = vunpack.c.l.s4 1983009808
        %v455 = vunpack.c.0.s8 %v454
        %v456 = vlaneseq
        %v457 = vshrl.u32 %v456, 7
        %v458 = vsub.s32 %v455, %v457
        %v459 = vrot.slane %v452, %v458
        %v461 = vmul.f32 %v449, %v459
        %v462 = vadd.f32 %v418, %v461
        %463 = vrot.lane.b32.xlu0 %v239, 32
        %v464 = vpop.permute.xlu0 %463
        %465 = vrot.lane.b32.xlu0 %v240, 32
        %v466 = vpop.permute.xlu0 %465
        %vm467 = vcmp.lt.s32.totalorder %v247, 32
        %v468 = vsel %vm467, %v464, %v466
        %v469 = vsel %vm467, %v466, %v464
        %s470 = scalar_lea.vmem [#allocation6], 40
        %v471 = vld [vmem:[%s470] sm:$0xf]
        %v474 = vcombine.low %v469, %v468
        %v476 = vunpack.c.l.s4 1983009808
        %v477 = vunpack.c.0.s8 %v476
        %v478 = vlaneseq
        %v479 = vshrl.u32 %v478, 7
        %v480 = vsub.s32 %v477, %v479
        %v481 = vrot.slane %v474, %v480
        %v483 = vmul.f32 %v471, %v481
        %v484 = vadd.f32 %v440, %v483
        %485 = vrot.lane.b32.xlu0 %v239, 31
        %v486 = vpop.permute.xlu0 %485
        %487 = vrot.lane.b32.xlu0 %v240, 31
        %v488 = vpop.permute.xlu0 %487
        %vm489 = vcmp.lt.s32.totalorder %v247, 31
        %v490 = vsel %vm489, %v486, %v488
        %v491 = vsel %vm489, %v488, %v486
        %s492 = scalar_lea.vmem [#allocation6], 44
        %v493 = vld [vmem:[%s492] sm:$0xf]
        %v496 = vcombine.low %v491, %v490
        %v498 = vunpack.c.l.s4 1983009808
        %v499 = vunpack.c.0.s8 %v498
        %v500 = vlaneseq
        %v501 = vshrl.u32 %v500, 7
        %v502 = vsub.s32 %v499, %v501
        %v503 = vrot.slane %v496, %v502
        %v505 = vmul.f32 %v493, %v503
        %v506 = vadd.f32 %v462, %v505
        %507 = vrot.lane.b32.xlu0 %v239, 30
        %v508 = vpop.permute.xlu0 %507
        %509 = vrot.lane.b32.xlu0 %v240, 30
        %v510 = vpop.permute.xlu0 %509
        %vm511 = vcmp.lt.s32.totalorder %v247, 30
        %v512 = vsel %vm511, %v508, %v510
        %v513 = vsel %vm511, %v510, %v508
        %s514 = scalar_lea.vmem [#allocation6], 48
        %v515 = vld [vmem:[%s514] sm:$0xf]
        %v518 = vcombine.low %v513, %v512
        %v520 = vunpack.c.l.s4 1983009808
        %v521 = vunpack.c.0.s8 %v520
        %v522 = vlaneseq
        %v523 = vshrl.u32 %v522, 7
        %v524 = vsub.s32 %v521, %v523
        %v525 = vrot.slane %v518, %v524
        %v527 = vmul.f32 %v515, %v525
        %v528 = vadd.f32 %v484, %v527
        %529 = vrot.lane.b32.xlu0 %v239, 29
        %v530 = vpop.permute.xlu0 %529
        %531 = vrot.lane.b32.xlu0 %v240, 29
        %v532 = vpop.permute.xlu0 %531
        %vm533 = vcmp.lt.s32.totalorder %v247, 29
        %v534 = vsel %vm533, %v530, %v532
        %v535 = vsel %vm533, %v532, %v530
        %s536 = scalar_lea.vmem [#allocation6], 52
        %v537 = vld [vmem:[%s536] sm:$0xf]
        %v540 = vcombine.low %v535, %v534
        %v542 = vunpack.c.l.s4 1983009808
        %v543 = vunpack.c.0.s8 %v542
        %v544 = vlaneseq
        %v545 = vshrl.u32 %v544, 7
        %v546 = vsub.s32 %v543, %v545
        %v547 = vrot.slane %v540, %v546
        %v549 = vmul.f32 %v537, %v547
        %v550 = vadd.f32 %v506, %v549
        %551 = vrot.lane.b32.xlu0 %v239, 19
        %v552 = vpop.permute.xlu0 %551
        %553 = vrot.lane.b32.xlu0 %v240, 19
        %v554 = vpop.permute.xlu0 %553
        %vm555 = vcmp.lt.s32.totalorder %v247, 19
        %v556 = vsel %vm555, %v552, %v554
        %v557 = vsel %vm555, %v554, %v552
        %s558 = scalar_lea.vmem [#allocation6], 56
        %v559 = vld [vmem:[%s558] sm:$0xf]
        %v562 = vcombine.low %v557, %v556
        %v564 = vunpack.c.l.s4 1983009808
        %v565 = vunpack.c.0.s8 %v564
        %v566 = vlaneseq
        %v567 = vshrl.u32 %v566, 7
        %v568 = vsub.s32 %v565, %v567
        %v569 = vrot.slane %v562, %v568
        %v571 = vmul.f32 %v559, %v569
        %v572 = vadd.f32 %v528, %v571
        %573 = vrot.lane.b32.xlu0 %v239, 18
        %v574 = vpop.permute.xlu0 %573
        %575 = vrot.lane.b32.xlu0 %v240, 18
        %v576 = vpop.permute.xlu0 %575
        %vm577 = vcmp.lt.s32.totalorder %v247, 18
        %v578 = vsel %vm577, %v574, %v576
        %v579 = vsel %vm577, %v576, %v574
        %s580 = scalar_lea.vmem [#allocation6], 60
        %v581 = vld [vmem:[%s580] sm:$0xf]
        %v584 = vcombine.low %v579, %v578
        %v586 = vunpack.c.l.s4 1983009808
        %v587 = vunpack.c.0.s8 %v586
        %v588 = vlaneseq
        %v589 = vshrl.u32 %v588, 7
        %v590 = vsub.s32 %v587, %v589
        %v591 = vrot.slane %v584, %v590
        %v593 = vmul.f32 %v581, %v591
        %v594 = vadd.f32 %v550, %v593
        %595 = vrot.lane.b32.xlu0 %v239, 17
        %v596 = vpop.permute.xlu0 %595
        %597 = vrot.lane.b32.xlu0 %v240, 17
        %v598 = vpop.permute.xlu0 %597
        %vm599 = vcmp.lt.s32.totalorder %v247, 17
        %v600 = vsel %vm599, %v596, %v598
        %v601 = vsel %vm599, %v598, %v596
        %s602 = scalar_lea.vmem [#allocation6], 64
        %v603 = vld [vmem:[%s602] sm:$0xf]
        %v606 = vcombine.low %v601, %v600
        %v608 = vunpack.c.l.s4 1983009808
        %v609 = vunpack.c.0.s8 %v608
        %v610 = vlaneseq
        %v611 = vshrl.u32 %v610, 7
        %v612 = vsub.s32 %v609, %v611
        %v613 = vrot.slane %v606, %v612
        %v615 = vmul.f32 %v603, %v613
        %v616 = vadd.f32 %v572, %v615
        %617 = vrot.lane.b32.xlu0 %v239, 16
        %v618 = vpop.permute.xlu0 %617
        %619 = vrot.lane.b32.xlu0 %v240, 16
        %v620 = vpop.permute.xlu0 %619
        %vm621 = vcmp.lt.s32.totalorder %v247, 16
        %v622 = vsel %vm621, %v618, %v620
        %v623 = vsel %vm621, %v620, %v618
        %s624 = scalar_lea.vmem [#allocation6], 68
        %v625 = vld [vmem:[%s624] sm:$0xf]
        %v628 = vcombine.low %v623, %v622
        %v630 = vunpack.c.l.s4 1983009808
        %v631 = vunpack.c.0.s8 %v630
        %v632 = vlaneseq
        %v633 = vshrl.u32 %v632, 7
        %v634 = vsub.s32 %v631, %v633
        %v635 = vrot.slane %v628, %v634
        %v637 = vmul.f32 %v625, %v635
        %v638 = vadd.f32 %v594, %v637
        %639 = vrot.lane.b32.xlu0 %v239, 15
        %v640 = vpop.permute.xlu0 %639
        %641 = vrot.lane.b32.xlu0 %v240, 15
        %v642 = vpop.permute.xlu0 %641
        %vm643 = vcmp.lt.s32.totalorder %v247, 15
        %v644 = vsel %vm643, %v640, %v642
        %v645 = vsel %vm643, %v642, %v640
        %s646 = scalar_lea.vmem [#allocation6], 72
        %v647 = vld [vmem:[%s646] sm:$0xf]
        %v650 = vcombine.low %v645, %v644
        %v652 = vunpack.c.l.s4 1983009808
        %v653 = vunpack.c.0.s8 %v652
        %v654 = vlaneseq
        %v655 = vshrl.u32 %v654, 7
        %v656 = vsub.s32 %v653, %v655
        %v657 = vrot.slane %v650, %v656
        %v659 = vmul.f32 %v647, %v657
        %v660 = vadd.f32 %v616, %v659
        %661 = vrot.lane.b32.xlu0 %v239, 14
        %v662 = vpop.permute.xlu0 %661
        %663 = vrot.lane.b32.xlu0 %v240, 14
        %v664 = vpop.permute.xlu0 %663
        %vm665 = vcmp.lt.s32.totalorder %v247, 14
        %v666 = vsel %vm665, %v662, %v664
        %v667 = vsel %vm665, %v664, %v662
        %s668 = scalar_lea.vmem [#allocation6], 76
        %v669 = vld [vmem:[%s668] sm:$0xf]
        %v672 = vcombine.low %v667, %v666
        %v674 = vunpack.c.l.s4 1983009808
        %v675 = vunpack.c.0.s8 %v674
        %v676 = vlaneseq
        %v677 = vshrl.u32 %v676, 7
        %v678 = vsub.s32 %v675, %v677
        %v679 = vrot.slane %v672, %v678
        %v681 = vmul.f32 %v669, %v679
        %v682 = vadd.f32 %v638, %v681
        %683 = vrot.lane.b32.xlu0 %v239, 13
        %v684 = vpop.permute.xlu0 %683
        %685 = vrot.lane.b32.xlu0 %v240, 13
        %v686 = vpop.permute.xlu0 %685
        %vm687 = vcmp.lt.s32.totalorder %v247, 13
        %v688 = vsel %vm687, %v684, %v686
        %v689 = vsel %vm687, %v686, %v684
        %s690 = scalar_lea.vmem [#allocation6], 80
        %v691 = vld [vmem:[%s690] sm:$0xf]
        %v694 = vcombine.low %v689, %v688
        %v696 = vunpack.c.l.s4 1983009808
        %v697 = vunpack.c.0.s8 %v696
        %v698 = vlaneseq
        %v699 = vshrl.u32 %v698, 7
        %v700 = vsub.s32 %v697, %v699
        %v701 = vrot.slane %v694, %v700
        %v703 = vmul.f32 %v691, %v701
        %v704 = vadd.f32 %v660, %v703
        %705 = vrot.lane.b32.xlu0 %v239, 3
        %v706 = vpop.permute.xlu0 %705
        %707 = vrot.lane.b32.xlu0 %v240, 3
        %v708 = vpop.permute.xlu0 %707
        %vm709 = vcmp.lt.s32.totalorder %v247, 3
        %v710 = vsel %vm709, %v706, %v708
        %v711 = vsel %vm709, %v708, %v706
        %s712 = scalar_lea.vmem [#allocation6], 84
        %v713 = vld [vmem:[%s712] sm:$0xf]
        %v716 = vcombine.low %v711, %v710
        %v718 = vunpack.c.l.s4 1983009808
        %v719 = vunpack.c.0.s8 %v718
        %v720 = vlaneseq
        %v721 = vshrl.u32 %v720, 7
        %v722 = vsub.s32 %v719, %v721
        %v723 = vrot.slane %v716, %v722
        %v725 = vmul.f32 %v713, %v723
        %v726 = vadd.f32 %v682, %v725
        %727 = vrot.lane.b32.xlu0 %v239, 2
        %v728 = vpop.permute.xlu0 %727
        %729 = vrot.lane.b32.xlu0 %v240, 2
        %v730 = vpop.permute.xlu0 %729
        %vm731 = vcmp.lt.s32.totalorder %v247, 2
        %v732 = vsel %vm731, %v728, %v730
        %v733 = vsel %vm731, %v730, %v728
        %s734 = scalar_lea.vmem [#allocation6], 88
        %v735 = vld [vmem:[%s734] sm:$0xf]
        %v738 = vcombine.low %v733, %v732
        %v740 = vunpack.c.l.s4 1983009808
        %v741 = vunpack.c.0.s8 %v740
        %v742 = vlaneseq
        %v743 = vshrl.u32 %v742, 7
        %v744 = vsub.s32 %v741, %v743
        %v745 = vrot.slane %v738, %v744
        %v747 = vmul.f32 %v735, %v745
        %v748 = vadd.f32 %v704, %v747
        %749 = vrot.lane.b32.xlu0 %v239, 1
        %v750 = vpop.permute.xlu0 %749
        %751 = vrot.lane.b32.xlu0 %v240, 1
        %v752 = vpop.permute.xlu0 %751
        %vm753 = vcmp.lt.s32.totalorder %v247, 1
        %v754 = vsel %vm753, %v750, %v752
        %v755 = vsel %vm753, %v752, %v750
        %s756 = scalar_lea.vmem [#allocation6], 92
        %v757 = vld [vmem:[%s756] sm:$0xf]
        %v760 = vcombine.low %v755, %v754
        %v762 = vunpack.c.l.s4 1983009808
        %v763 = vunpack.c.0.s8 %v762
        %v764 = vlaneseq
        %v765 = vshrl.u32 %v764, 7
        %v766 = vsub.s32 %v763, %v765
        %v767 = vrot.slane %v760, %v766
        %v769 = vmul.f32 %v757, %v767
        %v770 = vadd.f32 %v726, %v769
        %s771 = scalar_lea.vmem [#allocation6], 96
        %v772 = vld [vmem:[%s771] sm:$0xf]
        %v775 = vcombine.low %v239, %v240
        %v777 = vunpack.c.l.s4 1983009808
        %v778 = vunpack.c.0.s8 %v777
        %v779 = vlaneseq
        %v780 = vshrl.u32 %v779, 7
        %v781 = vsub.s32 %v778, %v780
        %v782 = vrot.slane %v775, %v781
        %v784 = vmul.f32 %v772, %v782
        %v785 = vadd.f32 %v748, %v784
        %786 = vrot.lane.b32.xlu0 %v239, 127
        %v787 = vpop.permute.xlu0 %786
        %788 = vrot.lane.b32.xlu0 %v240, 127
        %v789 = vpop.permute.xlu0 %788
        %vm790 = vcmp.lt.s32.totalorder %v247, 127
        %v791 = vsel %vm790, %v787, %v789
        %v792 = vsel %vm790, %v789, %v787
        %s793 = scalar_lea.vmem [#allocation6], 100
        %v794 = vld [vmem:[%s793] sm:$0xf]
        %v797 = vcombine.low %v791, %v792
        %v799 = vunpack.c.l.s4 1983009808
        %v800 = vunpack.c.0.s8 %v799
        %v801 = vlaneseq
        %v802 = vshrl.u32 %v801, 7
        %v803 = vsub.s32 %v800, %v802
        %v804 = vrot.slane %v797, %v803
        %v806 = vmul.f32 %v794, %v804
        %v807 = vadd.f32 %v770, %v806
        %808 = vrot.lane.b32.xlu0 %v239, 126
        %v809 = vpop.permute.xlu0 %808
        %810 = vrot.lane.b32.xlu0 %v240, 126
        %v811 = vpop.permute.xlu0 %810
        %vm812 = vcmp.lt.s32.totalorder %v247, 126
        %v813 = vsel %vm812, %v809, %v811
        %v814 = vsel %vm812, %v811, %v809
        %s815 = scalar_lea.vmem [#allocation6], 104
        %v816 = vld [vmem:[%s815] sm:$0xf]
        %v819 = vcombine.low %v813, %v814
        %v821 = vunpack.c.l.s4 1983009808
        %v822 = vunpack.c.0.s8 %v821
        %v823 = vlaneseq
        %v824 = vshrl.u32 %v823, 7
        %v825 = vsub.s32 %v822, %v824
        %v826 = vrot.slane %v819, %v825
        %v828 = vmul.f32 %v816, %v826
        %v829 = vadd.f32 %v785, %v828
        %830 = vrot.lane.b32.xlu0 %v239, 125
        %v831 = vpop.permute.xlu0 %830
        %832 = vrot.lane.b32.xlu0 %v240, 125
        %v833 = vpop.permute.xlu0 %832
        %vm834 = vcmp.lt.s32.totalorder %v247, 125
        %v835 = vsel %vm834, %v831, %v833
        %v836 = vsel %vm834, %v833, %v831
        %s837 = scalar_lea.vmem [#allocation6], 108
        %v838 = vld [vmem:[%s837] sm:$0xf]
        %v841 = vcombine.low %v835, %v836
        %v843 = vunpack.c.l.s4 1983009808
        %v844 = vunpack.c.0.s8 %v843
        %v845 = vlaneseq
        %v846 = vshrl.u32 %v845, 7
        %v847 = vsub.s32 %v844, %v846
        %v848 = vrot.slane %v841, %v847
        %v850 = vmul.f32 %v838, %v848
        %v851 = vadd.f32 %v807, %v850
        %852 = vrot.lane.b32.xlu0 %v239, 115
        %v853 = vpop.permute.xlu0 %852
        %854 = vrot.lane.b32.xlu0 %v240, 115
        %v855 = vpop.permute.xlu0 %854
        %vm856 = vcmp.lt.s32.totalorder %v247, 115
        %v857 = vsel %vm856, %v853, %v855
        %v858 = vsel %vm856, %v855, %v853
        %s859 = scalar_lea.vmem [#allocation6], 112
        %v860 = vld [vmem:[%s859] sm:$0xf]
        %v863 = vcombine.low %v857, %v858
        %v865 = vunpack.c.l.s4 1983009808
        %v866 = vunpack.c.0.s8 %v865
        %v867 = vlaneseq
        %v868 = vshrl.u32 %v867, 7
        %v869 = vsub.s32 %v866, %v868
        %v870 = vrot.slane %v863, %v869
        %v872 = vmul.f32 %v860, %v870
        %v873 = vadd.f32 %v829, %v872
        %874 = vrot.lane.b32.xlu0 %v239, 114
        %v875 = vpop.permute.xlu0 %874
        %876 = vrot.lane.b32.xlu0 %v240, 114
        %v877 = vpop.permute.xlu0 %876
        %vm878 = vcmp.lt.s32.totalorder %v247, 114
        %v879 = vsel %vm878, %v875, %v877
        %v880 = vsel %vm878, %v877, %v875
        %s881 = scalar_lea.vmem [#allocation6], 116
        %v882 = vld [vmem:[%s881] sm:$0xf]
        %v885 = vcombine.low %v879, %v880
        %v887 = vunpack.c.l.s4 1983009808
        %v888 = vunpack.c.0.s8 %v887
        %v889 = vlaneseq
        %v890 = vshrl.u32 %v889, 7
        %v891 = vsub.s32 %v888, %v890
        %v892 = vrot.slane %v885, %v891
        %v894 = vmul.f32 %v882, %v892
        %v895 = vadd.f32 %v851, %v894
        %896 = vrot.lane.b32.xlu0 %v239, 113
        %v897 = vpop.permute.xlu0 %896
        %898 = vrot.lane.b32.xlu0 %v240, 113
        %v899 = vpop.permute.xlu0 %898
        %vm900 = vcmp.lt.s32.totalorder %v247, 113
        %v901 = vsel %vm900, %v897, %v899
        %v902 = vsel %vm900, %v899, %v897
        %s903 = scalar_lea.vmem [#allocation6], 120
        %v904 = vld [vmem:[%s903] sm:$0xf]
        %v907 = vcombine.low %v901, %v902
        %v909 = vunpack.c.l.s4 1983009808
        %v910 = vunpack.c.0.s8 %v909
        %v911 = vlaneseq
        %v912 = vshrl.u32 %v911, 7
        %v913 = vsub.s32 %v910, %v912
        %v914 = vrot.slane %v907, %v913
        %v916 = vmul.f32 %v904, %v914
        %v917 = vadd.f32 %v873, %v916
        %918 = vrot.lane.b32.xlu0 %v239, 112
        %v919 = vpop.permute.xlu0 %918
        %920 = vrot.lane.b32.xlu0 %v240, 112
        %v921 = vpop.permute.xlu0 %920
        %vm922 = vcmp.lt.s32.totalorder %v247, 112
        %v923 = vsel %vm922, %v919, %v921
        %v924 = vsel %vm922, %v921, %v919
        %s925 = scalar_lea.vmem [#allocation6], 124
        %v926 = vld [vmem:[%s925] sm:$0xf]
        %v929 = vcombine.low %v923, %v924
        %v931 = vunpack.c.l.s4 1983009808
        %v932 = vunpack.c.0.s8 %v931
        %v933 = vlaneseq
        %v934 = vshrl.u32 %v933, 7
        %v935 = vsub.s32 %v932, %v934
        %v936 = vrot.slane %v929, %v935
        %v938 = vmul.f32 %v926, %v936
        %v939 = vadd.f32 %v895, %v938
        %940 = vrot.lane.b32.xlu0 %v239, 111
        %v941 = vpop.permute.xlu0 %940
        %942 = vrot.lane.b32.xlu0 %v240, 111
        %v943 = vpop.permute.xlu0 %942
        %vm944 = vcmp.lt.s32.totalorder %v247, 111
        %v945 = vsel %vm944, %v941, %v943
        %v946 = vsel %vm944, %v943, %v941
        %s947 = scalar_lea.vmem [#allocation6], 128
        %v948 = vld [vmem:[%s947] sm:$0xf]
        %v951 = vcombine.low %v945, %v946
        %v953 = vunpack.c.l.s4 1983009808
        %v954 = vunpack.c.0.s8 %v953
        %v955 = vlaneseq
        %v956 = vshrl.u32 %v955, 7
        %v957 = vsub.s32 %v954, %v956
        %v958 = vrot.slane %v951, %v957
        %v960 = vmul.f32 %v948, %v958
        %v961 = vadd.f32 %v917, %v960
        %962 = vrot.lane.b32.xlu0 %v239, 110
        %v963 = vpop.permute.xlu0 %962
        %964 = vrot.lane.b32.xlu0 %v240, 110
        %v965 = vpop.permute.xlu0 %964
        %vm966 = vcmp.lt.s32.totalorder %v247, 110
        %v967 = vsel %vm966, %v963, %v965
        %v968 = vsel %vm966, %v965, %v963
        %s969 = scalar_lea.vmem [#allocation6], 132
        %v970 = vld [vmem:[%s969] sm:$0xf]
        %v973 = vcombine.low %v967, %v968
        %v975 = vunpack.c.l.s4 1983009808
        %v976 = vunpack.c.0.s8 %v975
        %v977 = vlaneseq
        %v978 = vshrl.u32 %v977, 7
        %v979 = vsub.s32 %v976, %v978
        %v980 = vrot.slane %v973, %v979
        %v982 = vmul.f32 %v970, %v980
        %v983 = vadd.f32 %v939, %v982
        %984 = vrot.lane.b32.xlu0 %v239, 109
        %v985 = vpop.permute.xlu0 %984
        %986 = vrot.lane.b32.xlu0 %v240, 109
        %v987 = vpop.permute.xlu0 %986
        %vm988 = vcmp.lt.s32.totalorder %v247, 109
        %v989 = vsel %vm988, %v985, %v987
        %v990 = vsel %vm988, %v987, %v985
        %s991 = scalar_lea.vmem [#allocation6], 136
        %v992 = vld [vmem:[%s991] sm:$0xf]
        %v995 = vcombine.low %v989, %v990
        %v997 = vunpack.c.l.s4 1983009808
        %v998 = vunpack.c.0.s8 %v997
        %v999 = vlaneseq
        %v1000 = vshrl.u32 %v999, 7
        %v1001 = vsub.s32 %v998, %v1000
        %v1002 = vrot.slane %v995, %v1001
        %v1004 = vmul.f32 %v992, %v1002
        %v1005 = vadd.f32 %v961, %v1004
        %1006 = vrot.lane.b32.xlu0 %v239, 99
        %v1007 = vpop.permute.xlu0 %1006
        %1008 = vrot.lane.b32.xlu0 %v240, 99
        %v1009 = vpop.permute.xlu0 %1008
        %vm1010 = vcmp.lt.s32.totalorder %v247, 99
        %v1011 = vsel %vm1010, %v1007, %v1009
        %v1012 = vsel %vm1010, %v1009, %v1007
        %s1013 = scalar_lea.vmem [#allocation6], 140
        %v1014 = vld [vmem:[%s1013] sm:$0xf]
        %v1017 = vcombine.low %v1011, %v1012
        %v1019 = vunpack.c.l.s4 1983009808
        %v1020 = vunpack.c.0.s8 %v1019
        %v1021 = vlaneseq
        %v1022 = vshrl.u32 %v1021, 7
        %v1023 = vsub.s32 %v1020, %v1022
        %v1024 = vrot.slane %v1017, %v1023
        %v1026 = vmul.f32 %v1014, %v1024
        %v1027 = vadd.f32 %v983, %v1026
        %1028 = vrot.lane.b32.xlu0 %v239, 98
        %v1029 = vpop.permute.xlu0 %1028
        %1030 = vrot.lane.b32.xlu0 %v240, 98
        %v1031 = vpop.permute.xlu0 %1030
        %vm1032 = vcmp.lt.s32.totalorder %v247, 98
        %v1033 = vsel %vm1032, %v1029, %v1031
        %v1034 = vsel %vm1032, %v1031, %v1029
        %s1035 = scalar_lea.vmem [#allocation6], 144
        %v1036 = vld [vmem:[%s1035] sm:$0xf]
        %v1039 = vcombine.low %v1033, %v1034
        %v1041 = vunpack.c.l.s4 1983009808
        %v1042 = vunpack.c.0.s8 %v1041
        %v1043 = vlaneseq
        %v1044 = vshrl.u32 %v1043, 7
        %v1045 = vsub.s32 %v1042, %v1044
        %v1046 = vrot.slane %v1039, %v1045
        %v1048 = vmul.f32 %v1036, %v1046
        %v1049 = vadd.f32 %v1005, %v1048
        %1050 = vrot.lane.b32.xlu0 %v239, 97
        %v1051 = vpop.permute.xlu0 %1050
        %1052 = vrot.lane.b32.xlu0 %v240, 97
        %v1053 = vpop.permute.xlu0 %1052
        %vm1054 = vcmp.lt.s32.totalorder %v247, 97
        %v1055 = vsel %vm1054, %v1051, %v1053
        %v1056 = vsel %vm1054, %v1053, %v1051
        %s1057 = scalar_lea.vmem [#allocation6], 148
        %v1058 = vld [vmem:[%s1057] sm:$0xf]
        %v1061 = vcombine.low %v1055, %v1056
        %v1063 = vunpack.c.l.s4 1983009808
        %v1064 = vunpack.c.0.s8 %v1063
        %v1065 = vlaneseq
        %v1066 = vshrl.u32 %v1065, 7
        %v1067 = vsub.s32 %v1064, %v1066
        %v1068 = vrot.slane %v1061, %v1067
        %v1070 = vmul.f32 %v1058, %v1068
        %v1071 = vadd.f32 %v1027, %v1070
        %1072 = vrot.lane.b32.xlu0 %v239, 96
        %v1073 = vpop.permute.xlu0 %1072
        %1074 = vrot.lane.b32.xlu0 %v240, 96
        %v1075 = vpop.permute.xlu0 %1074
        %vm1076 = vcmp.lt.s32.totalorder %v247, 96
        %v1077 = vsel %vm1076, %v1073, %v1075
        %v1078 = vsel %vm1076, %v1075, %v1073
        %s1079 = scalar_lea.vmem [#allocation6], 152
        %v1080 = vld [vmem:[%s1079] sm:$0xf]
        %v1083 = vcombine.low %v1077, %v1078
        %v1085 = vunpack.c.l.s4 1983009808
        %v1086 = vunpack.c.0.s8 %v1085
        %v1087 = vlaneseq
        %v1088 = vshrl.u32 %v1087, 7
        %v1089 = vsub.s32 %v1086, %v1088
        %v1090 = vrot.slane %v1083, %v1089
        %v1092 = vmul.f32 %v1080, %v1090
        %v1093 = vadd.f32 %v1049, %v1092
        %1094 = vrot.lane.b32.xlu0 %v239, 95
        %v1095 = vpop.permute.xlu0 %1094
        %1096 = vrot.lane.b32.xlu0 %v240, 95
        %v1097 = vpop.permute.xlu0 %1096
        %vm1098 = vcmp.lt.s32.totalorder %v247, 95
        %v1099 = vsel %vm1098, %v1095, %v1097
        %v1100 = vsel %vm1098, %v1097, %v1095
        %s1101 = scalar_lea.vmem [#allocation6], 156
        %v1102 = vld [vmem:[%s1101] sm:$0xf]
        %v1105 = vcombine.low %v1099, %v1100
        %v1107 = vunpack.c.l.s4 1983009808
        %v1108 = vunpack.c.0.s8 %v1107
        %v1109 = vlaneseq
        %v1110 = vshrl.u32 %v1109, 7
        %v1111 = vsub.s32 %v1108, %v1110
        %v1112 = vrot.slane %v1105, %v1111
        %v1114 = vmul.f32 %v1102, %v1112
        %v1115 = vadd.f32 %v1071, %v1114
        %1116 = vrot.lane.b32.xlu0 %v239, 94
        %v1117 = vpop.permute.xlu0 %1116
        %1118 = vrot.lane.b32.xlu0 %v240, 94
        %v1119 = vpop.permute.xlu0 %1118
        %vm1120 = vcmp.lt.s32.totalorder %v247, 94
        %v1121 = vsel %vm1120, %v1117, %v1119
        %v1122 = vsel %vm1120, %v1119, %v1117
        %s1123 = scalar_lea.vmem [#allocation6], 160
        %v1124 = vld [vmem:[%s1123] sm:$0xf]
        %v1127 = vcombine.low %v1121, %v1122
        %v1129 = vunpack.c.l.s4 1983009808
        %v1130 = vunpack.c.0.s8 %v1129
        %v1131 = vlaneseq
        %v1132 = vshrl.u32 %v1131, 7
        %v1133 = vsub.s32 %v1130, %v1132
        %v1134 = vrot.slane %v1127, %v1133
        %v1136 = vmul.f32 %v1124, %v1134
        %v1137 = vadd.f32 %v1093, %v1136
        %1138 = vrot.lane.b32.xlu0 %v239, 93
        %v1139 = vpop.permute.xlu0 %1138
        %1140 = vrot.lane.b32.xlu0 %v240, 93
        %v1141 = vpop.permute.xlu0 %1140
        %vm1142 = vcmp.lt.s32.totalorder %v247, 93
        %v1143 = vsel %vm1142, %v1139, %v1141
        %v1144 = vsel %vm1142, %v1141, %v1139
        %s1145 = scalar_lea.vmem [#allocation6], 164
        %v1146 = vld [vmem:[%s1145] sm:$0xf]
        %v1149 = vcombine.low %v1143, %v1144
        %v1151 = vunpack.c.l.s4 1983009808
        %v1152 = vunpack.c.0.s8 %v1151
        %v1153 = vlaneseq
        %v1154 = vshrl.u32 %v1153, 7
        %v1155 = vsub.s32 %v1152, %v1154
        %v1156 = vrot.slane %v1149, %v1155
        %v1158 = vmul.f32 %v1146, %v1156
        %v1159 = vadd.f32 %v1115, %v1158
        %1160 = vrot.lane.b32.xlu0 %v239, 83
        %v1161 = vpop.permute.xlu0 %1160
        %1162 = vrot.lane.b32.xlu0 %v240, 83
        %v1163 = vpop.permute.xlu0 %1162
        %vm1164 = vcmp.lt.s32.totalorder %v247, 83
        %v1165 = vsel %vm1164, %v1161, %v1163
        %v1166 = vsel %vm1164, %v1163, %v1161
        %s1167 = scalar_lea.vmem [#allocation6], 168
        %v1168 = vld [vmem:[%s1167] sm:$0xf]
        %v1171 = vcombine.low %v1165, %v1166
        %v1173 = vunpack.c.l.s4 1983009808
        %v1174 = vunpack.c.0.s8 %v1173
        %v1175 = vlaneseq
        %v1176 = vshrl.u32 %v1175, 7
        %v1177 = vsub.s32 %v1174, %v1176
        %v1178 = vrot.slane %v1171, %v1177
        %v1180 = vmul.f32 %v1168, %v1178
        %v1181 = vadd.f32 %v1137, %v1180
        %1182 = vrot.lane.b32.xlu0 %v239, 82
        %v1183 = vpop.permute.xlu0 %1182
        %1184 = vrot.lane.b32.xlu0 %v240, 82
        %v1185 = vpop.permute.xlu0 %1184
        %vm1186 = vcmp.lt.s32.totalorder %v247, 82
        %v1187 = vsel %vm1186, %v1183, %v1185
        %v1188 = vsel %vm1186, %v1185, %v1183
        %s1189 = scalar_lea.vmem [#allocation6], 172
        %v1190 = vld [vmem:[%s1189] sm:$0xf]
        %v1193 = vcombine.low %v1187, %v1188
        %v1195 = vunpack.c.l.s4 1983009808
        %v1196 = vunpack.c.0.s8 %v1195
        %v1197 = vlaneseq
        %v1198 = vshrl.u32 %v1197, 7
        %v1199 = vsub.s32 %v1196, %v1198
        %v1200 = vrot.slane %v1193, %v1199
        %v1202 = vmul.f32 %v1190, %v1200
        %v1203 = vadd.f32 %v1159, %v1202
        %1204 = vrot.lane.b32.xlu0 %v239, 81
        %v1205 = vpop.permute.xlu0 %1204
        %1206 = vrot.lane.b32.xlu0 %v240, 81
        %v1207 = vpop.permute.xlu0 %1206
        %vm1208 = vcmp.lt.s32.totalorder %v247, 81
        %v1209 = vsel %vm1208, %v1205, %v1207
        %v1210 = vsel %vm1208, %v1207, %v1205
        %s1211 = scalar_lea.vmem [#allocation6], 176
        %v1212 = vld [vmem:[%s1211] sm:$0xf]
        %v1215 = vcombine.low %v1209, %v1210
        %v1217 = vunpack.c.l.s4 1983009808
        %v1218 = vunpack.c.0.s8 %v1217
        %v1219 = vlaneseq
        %v1220 = vshrl.u32 %v1219, 7
        %v1221 = vsub.s32 %v1218, %v1220
        %v1222 = vrot.slane %v1215, %v1221
        %v1224 = vmul.f32 %v1212, %v1222
        %v1225 = vadd.f32 %v1181, %v1224
        %1226 = vrot.lane.b32.xlu0 %v239, 80
        %v1227 = vpop.permute.xlu0 %1226
        %1228 = vrot.lane.b32.xlu0 %v240, 80
        %v1229 = vpop.permute.xlu0 %1228
        %vm1230 = vcmp.lt.s32.totalorder %v247, 80
        %v1231 = vsel %vm1230, %v1227, %v1229
        %v1232 = vsel %vm1230, %v1229, %v1227
        %s1233 = scalar_lea.vmem [#allocation6], 180
        %v1234 = vld [vmem:[%s1233] sm:$0xf]
        %v1237 = vcombine.low %v1231, %v1232
        %v1239 = vunpack.c.l.s4 1983009808
        %v1240 = vunpack.c.0.s8 %v1239
        %v1241 = vlaneseq
        %v1242 = vshrl.u32 %v1241, 7
        %v1243 = vsub.s32 %v1240, %v1242
        %v1244 = vrot.slane %v1237, %v1243
        %v1246 = vmul.f32 %v1234, %v1244
        %v1247 = vadd.f32 %v1203, %v1246
        %1248 = vrot.lane.b32.xlu0 %v239, 79
        %v1249 = vpop.permute.xlu0 %1248
        %1250 = vrot.lane.b32.xlu0 %v240, 79
        %v1251 = vpop.permute.xlu0 %1250
        %vm1252 = vcmp.lt.s32.totalorder %v247, 79
        %v1253 = vsel %vm1252, %v1249, %v1251
        %v1254 = vsel %vm1252, %v1251, %v1249
        %s1255 = scalar_lea.vmem [#allocation6], 184
        %v1256 = vld [vmem:[%s1255] sm:$0xf]
        %v1259 = vcombine.low %v1253, %v1254
        %v1261 = vunpack.c.l.s4 1983009808
        %v1262 = vunpack.c.0.s8 %v1261
        %v1263 = vlaneseq
        %v1264 = vshrl.u32 %v1263, 7
        %v1265 = vsub.s32 %v1262, %v1264
        %v1266 = vrot.slane %v1259, %v1265
        %v1268 = vmul.f32 %v1256, %v1266
        %v1269 = vadd.f32 %v1225, %v1268
        %1270 = vrot.lane.b32.xlu0 %v239, 78
        %v1271 = vpop.permute.xlu0 %1270
        %1272 = vrot.lane.b32.xlu0 %v240, 78
        %v1273 = vpop.permute.xlu0 %1272
        %vm1274 = vcmp.lt.s32.totalorder %v247, 78
        %v1275 = vsel %vm1274, %v1271, %v1273
        %v1276 = vsel %vm1274, %v1273, %v1271
        %s1277 = scalar_lea.vmem [#allocation6], 188
        %v1278 = vld [vmem:[%s1277] sm:$0xf]
        %v1281 = vcombine.low %v1275, %v1276
        %v1283 = vunpack.c.l.s4 1983009808
        %v1284 = vunpack.c.0.s8 %v1283
        %v1285 = vlaneseq
        %v1286 = vshrl.u32 %v1285, 7
        %v1287 = vsub.s32 %v1284, %v1286
        %v1288 = vrot.slane %v1281, %v1287
        %v1290 = vmul.f32 %v1278, %v1288
        %v1291 = vadd.f32 %v1247, %v1290
        %1292 = vrot.lane.b32.xlu0 %v239, 77
        %v1293 = vpop.permute.xlu0 %1292
        %1294 = vrot.lane.b32.xlu0 %v240, 77
        %v1295 = vpop.permute.xlu0 %1294
        %vm1296 = vcmp.lt.s32.totalorder %v247, 77
        %v1297 = vsel %vm1296, %v1293, %v1295
        %v1298 = vsel %vm1296, %v1295, %v1293
        %s1299 = scalar_lea.vmem [#allocation6], 192
        %v1300 = vld [vmem:[%s1299] sm:$0xf]
        %v1303 = vcombine.low %v1297, %v1298
        %v1305 = vunpack.c.l.s4 1983009808
        %v1306 = vunpack.c.0.s8 %v1305
        %v1307 = vlaneseq
        %v1308 = vshrl.u32 %v1307, 7
        %v1309 = vsub.s32 %v1306, %v1308
        %v1310 = vrot.slane %v1303, %v1309
        %v1312 = vmul.f32 %v1300, %v1310
        %v1313 = vadd.f32 %v1269, %v1312
        %v1314 = vadd.f32 %v1313, %v1291
        %v1316 = vrot.slane %v1314, 7
        %v1317 = vrot.slane %v1316, 2
        %v1319 = vadd.f32 %v1314, %v1317
        %v1320 = vstv %s241
        %v1321 = vadd.f32 %v1319, %v1320
        %v1322 = vxor.u32 %v1321, 2147483648
        %v1323 = vmul.f32 %v1322, 1.442695
        %v1324 = vpow.pop %v1323
        %v1325 = vadd.f32 %v1324, 1.0
        %v1326 = vrcp.pop %v1325
        %v1327 = vmul.f32 1.0, %v1326
        %v1329 = vlaneseq
        %v1330 = vshrl.u32 %v1329, 7
        %v1331 = vsub.s32 0, %v1330
        %v1332 = vrot.slane %v1327, %v1331
        %v1333 = vlaneseq
        %v1334 = vshrl.u32 %v1333, 7
        %v1335 = vsub.s32 2, %v1334
        %v1336 = vrot.slane %v1327, %v1335
        %v1339 = vlaneseq
        %v1340 = vshrl.u32 %v1339, 7
        %v1341 = vsub.s32 0, %v1340
        %v1342 = vrot.slane %v1332, %v1341
        %v1343 = vlaneseq
        %v1344 = vshrl.u32 %v1343, 7
        %v1345 = vsub.s32 0, %v1344
        %v1346 = vrot.slane %v1336, %v1345
        %v1349 = vcombine.low %v1342, %v1346
        %v1351 = vmul.f32 %v203, %v1349
        %1352 = vst [vmem:[%s202] sm:$0xff] %v1351
        %s1353 = sand.u32 %s98, 1
        %s1354 = scalar_lea.sflag [#allocation5], %s1353
        %s1355 = sand.u32 %s98, 1
        %s1356 = smul.addr %s1355, 8
        %s1357 = scalar_lea.vmem [#allocation8], %s1356
        // Predicated region
        $region41: #{tpu_custom_call.1} parent=31 // pred_check
          %p1358 = pneg %p108
        $region42: #{tpu_custom_call.1} parent=31 // pred_check_branch
          %1360 = sbr.rel (%p1358) target = $region44
        $region43: #{tpu_custom_call.1} parent=31 // pred_region
          %s1362 = ssub.s32 128, 128
          %1363 = vsyncadd %s1354, %s1362
          %s1364 = smul.addr %s22, 2
          %s1365 = smul.addr %s1364, 64
          %s1366 = scalar_lea.hbm %s3, %s1365
          %s1368 = sshll.u32 %s1357, 4
          %s1369 = int_to_ptr.vmem [resolvable:$true] %s1368
          %1371 = dma.vmem_to_hbm [thread:$0]  %s1369, 128, %s1366, %s1354
        $region44: #{tpu_custom_call.1} parent=31 // pred_fallthru
          _
      $region32: #{tpu_custom_call.1} parent=5 // pred_fallthru
        _
      %p1372 = scmp.le.s32.totalorder 2, %s17
      // Predicated region
      $region45: #{tpu_custom_call.1} parent=5 // pred_check
        %p1373 = pneg %p1372
      $region46: #{tpu_custom_call.1} parent=5 // pred_check_branch
        %1375 = sbr.rel (%p1373) target = $region48
      $region47: #{tpu_custom_call.1} parent=5 // pred_region
        %s1376 = ssub.s32 %s17, 2
        // Predicated region
        $region49: #{tpu_custom_call.1} parent=47 // pred_check
          %p1377 = pneg %p114
        $region50: #{tpu_custom_call.1} parent=47 // pred_check_branch
          %1379 = sbr.rel (%p1377) target = $region52
        $region51: #{tpu_custom_call.1} parent=47 // pred_region
          %s1380 = sand.u32 %s99, 1
          %s1381 = scalar_lea.sflag [#allocation5], %s1380
          %s1382 = sand.u32 %s99, 1
          %s1383 = smul.addr %s1382, 8
          %s1384 = scalar_lea.vmem [#allocation8], %s1383
          %1385 = dma.done %s1381, 128
        $region52: #{tpu_custom_call.1} parent=47 // pred_fallthru
          _
      $region48: #{tpu_custom_call.1} parent=5 // pred_fallthru
        _
    $region6: #{tpu_custom_call.1} parent=1 // loop_footer
      %s21 = sadd.s32 1, %s17
    $region7: #{tpu_custom_call.1} parent=1 // loop_footer_branch
      %16 = sbr.rel target = $region3
    $region8: #{tpu_custom_call.1} parent=1 // loop_exit
      _
    %1386 = vsyncpa [#allocation4], 1
    %s1387 = scalar_lea.sflag [#allocation4], 1
    %1388 = vsyncpa %s1387, 1
    %1389 = vsyncpa [#allocation7], 1
    %1390 = vsyncpa [#allocation5], 1
    %s1391 = scalar_lea.sflag [#allocation5], 1
    %1392 = vsyncpa %s1391, 1

</llo_original>
